<compile_context>
chip_gen: v7x
topology: tpu7x:2x2x1
jax: 0.10.0
libtpu: 0.0.40
codegen_flags: <defaults>
</compile_context>

<pallas_src>
import jax
import jax.numpy as jnp
from jax.experimental import pallas as pl
from jax.experimental.pallas import tpu as pltpu


def attn_kernel(q_ref, k_ref, v_ref, w1q_ref, w1k_ref, b1_ref, w2_ref,
                ctx_ref, attn_ref):
    # Per-grid-step refs (TB batch elements):
    #   q_ref:  (TB, H)      k_ref/v_ref: (TB, S, H)
    #   w1q/w1k: (H, H)      b1: (1, H)   w2: (1, H)   (weights resident in VMEM)
    #   ctx_ref: (TB, 1, H)  attn_ref: (TB, 1, S)      (lane-dense attn output)
    TB, S, H = k_ref.shape

    q = q_ref[...]                    # (TB, H)
    k = k_ref[...]                    # (TB, S, H)
    v = v_ref[...]                    # (TB, S, H)

    # Hidden layer of the attention MLP: Linear(2H -> H) split into q/k halves.
    # Two MXU matmuls per step: (TB, H) @ (H, H) and (TB*S, H) @ (H, H).
    hq = jnp.dot(q, w1q_ref[...], preferred_element_type=jnp.float32)        # (TB, H)
    hk = jnp.dot(k.reshape(TB * S, H), w1k_ref[...],
                 preferred_element_type=jnp.float32).reshape(TB, S, H)       # (TB, S, H)
    h = hk + hq[:, None, :] + b1_ref[...].astype(jnp.float32)                # (TB, S, H)
    h = jnp.maximum(h, 0.0)                                                  # ReLU

    # Unnormalized scores, lane-dense: (TB, 1, S) with S on the lane axis.
    # (b2 is dropped — a constant added to all scores cancels in softmax.)
    w2_row = jnp.broadcast_to(w2_ref[...].astype(jnp.float32)[None], (TB, 1, H))
    scores = jnp.einsum("bqh,bsh->bqs", w2_row, h,
                        preferred_element_type=jnp.float32)                  # (TB, 1, S)

    # Softmax over the sequence axis (lane reduce), per batch element.
    m = jnp.max(scores, axis=-1, keepdims=True)                              # (TB, 1, 1)
    e = jnp.exp(scores - m)                                                  # (TB, 1, S)
    denom = jnp.sum(e, axis=-1, keepdims=True)                               # (TB, 1, 1)
    attn = e * pl.reciprocal(denom, approx=False)  # approx=True if tolerance allows

    # Context = attn @ values, batched on the MXU: (TB,1,S) x (TB,S,H) -> (TB,1,H).
    ctx = jnp.einsum("bqs,bsh->bqh", attn.astype(v.dtype), v,
                     preferred_element_type=jnp.float32)

    ctx_ref[...] = ctx.astype(ctx_ref.dtype)
    attn_ref[...] = attn.astype(attn_ref.dtype)


def _pick_tb(batch, seq_len, hidden, itemsize):
    """Batch-tile size: multiple of 8 (sublane-aligned 2-D queries block), divides
    batch, fits a conservative VMEM budget, and leaves >= 2 grid steps when
    possible so the parallel grid axis can shard across v7x's two TensorCores."""
    if batch % 8 != 0:
        return batch  # tiny / odd batches: whole batch in one grid step
    # Double-buffered K + V tiles dominate VMEM; keep them under ~8 MiB
    # (comfortably inside v5e 16 MiB / v6e 32 MiB / v7x 32 MiB scoped defaults).
    budget = 8 * 1024 * 1024
    per_batch_bytes = 2 * 2 * seq_len * hidden * itemsize
    cap = max(8, min(batch, (budget // max(per_batch_bytes, 1)) // 8 * 8))
    cands = [t for t in range(8, cap + 1, 8) if batch % t == 0]
    prefer = [t for t in cands if batch // t >= 2]
    return (prefer or cands)[-1]


def attention_forward(queries, keys, values, params, *, compute_dtype=None):
    """queries: (B, H); keys/values: (B, S, H) -> (context (B,1,H), attn (B,S,1))."""
    B, S, H = keys.shape
    w1q, w1k, b1, w2_row, _b2 = params   # b2 is a no-op under softmax -> not passed
    out_dtype = queries.dtype

    if compute_dtype is not None:
        # Feed the MXU bf16 / halve K,V HBM bytes (v6e/v7x); softmax stays f32.
        queries = queries.astype(compute_dtype)
        keys = keys.astype(compute_dtype)
        values = values.astype(compute_dtype)
        w1q = w1q.astype(compute_dtype)
        w1k = w1k.astype(compute_dtype)

    tb = _pick_tb(B, S, H, jnp.dtype(keys.dtype).itemsize)
    grid = (B // tb,)

    grid_spec = pltpu.PrefetchScalarGridSpec(
        num_scalar_prefetch=0,
        grid=grid,
        in_specs=[
            pl.BlockSpec((tb, H), lambda i: (i, 0)),        # queries
            pl.BlockSpec((tb, S, H), lambda i: (i, 0, 0)),  # keys
            pl.BlockSpec((tb, S, H), lambda i: (i, 0, 0)),  # values
            pl.BlockSpec((H, H), lambda i: (0, 0)),         # W1 (query half) - resident
            pl.BlockSpec((H, H), lambda i: (0, 0)),         # W1 (key half)   - resident
            pl.BlockSpec((1, H), lambda i: (0, 0)),         # b1              - resident
            pl.BlockSpec((1, H), lambda i: (0, 0)),         # w2 row          - resident
        ],
        out_specs=[
            pl.BlockSpec((tb, 1, H), lambda i: (i, 0, 0)),  # context
            pl.BlockSpec((tb, 1, S), lambda i: (i, 0, 0)),  # attention weights (lane-dense)
        ],
    )

    ctx, attn = pl.pallas_call(
        attn_kernel,
        out_shape=(
            jax.ShapeDtypeStruct((B, 1, H), out_dtype),
            jax.ShapeDtypeStruct((B, 1, S), out_dtype),
        ),
        grid_spec=grid_spec,
        compiler_params=pltpu.CompilerParams(
            dimension_semantics=("parallel",),   # shards grid across v7x's 2 TCs
        ),
    )(queries, keys, values, w1q, w1k, b1, w2_row)

    # (B, 1, S) -> (B, S, 1): pure metadata reshape outside the kernel.
    return ctx, attn.reshape(B, S, 1)


def reference_forward(queries, keys, values, params):
    """Pure-JAX reference mirroring the PyTorch module exactly (including b2)."""
    w1q, w1k, b1, w2_row, b2 = params
    B, S, H = keys.shape
    q_exp = jnp.broadcast_to(queries[:, None, :], (B, S, H))
    x = jnp.concatenate([q_exp, keys], axis=2)                   # (B, S, 2H)
    w1 = jnp.concatenate([w1q, w1k], axis=0)                     # (2H, H)
    h = jnp.maximum(x @ w1 + b1, 0.0)                            # (B, S, H)
    scores = h @ w2_row.T + b2                                   # (B, S, 1)
    attn = jax.nn.softmax(scores, axis=1)                        # (B, S, 1)
    ctx = jnp.einsum("bs,bsh->bh", attn[..., 0], values)[:, None, :]
    return ctx, attn


if __name__ == "__main__":
    B, S, H = 16, 8, 32
    key = jax.random.PRNGKey(0)
    kq, kk, kv, k1, k2, k3, k4, k5 = jax.random.split(key, 8)

    queries = jax.random.normal(kq, (B, H), dtype=jnp.float32)
    keys = jax.random.normal(kk, (B, S, H), dtype=jnp.float32)
    values = jax.random.normal(kv, (B, S, H), dtype=jnp.float32)

    # Deterministic synthetic parameters for the attention MLP
    # (Linear(2H->H) split into query/key halves, Linear(H->1) as a (1,H) row).
    scale1 = 1.0 / jnp.sqrt(2.0 * H)
    scale2 = 1.0 / jnp.sqrt(1.0 * H)
    w1q = jax.random.normal(k1, (H, H), dtype=jnp.float32) * scale1
    w1k = jax.random.normal(k2, (H, H), dtype=jnp.float32) * scale1
    b1 = jax.random.normal(k3, (1, H), dtype=jnp.float32) * scale1
    w2 = jax.random.normal(k4, (1, H), dtype=jnp.float32) * scale2
    b2 = jax.random.normal(k5, (1, 1), dtype=jnp.float32) * scale2
    params = (w1q, w1k, b1, w2, b2)

    # f32 path (exact semantics of the PyTorch module).
    ctx, attn = attention_forward(queries, keys, values, params)
    jax.block_until_ready((ctx, attn))

    ctx_ref, attn_ref = reference_forward(queries, keys, values, params)
    assert ctx.shape == (B, 1, H) and attn.shape == (B, S, 1)
    assert jnp.allclose(ctx, ctx_ref, atol=1e-5, rtol=1e-5)
    assert jnp.allclose(attn, attn_ref, atol=1e-5, rtol=1e-5)

    # bf16-fed MXU path (v6e/v7x recommendation); accumulation/softmax stay f32.
    ctx_bf, attn_bf = attention_forward(queries, keys, values, params,
                                        compute_dtype=jnp.bfloat16)
    jax.block_until_ready((ctx_bf, attn_bf))
    assert jnp.allclose(ctx_bf, ctx_ref, atol=1e-1, rtol=1e-1)
    assert jnp.allclose(attn_bf, attn_ref, atol=1e-1, rtol=1e-1)

    print("KERNEL_OK")
</pallas_src>

<mosaic_0001>
module attributes {stable_mosaic.version = 11 : i64} {
  func.func @attn_kernel(%arg0: i32, %arg1: memref<8x32xf32, #tpu.memory_space<vmem>>, %arg2: memref<8x8x32xf32, #tpu.memory_space<vmem>>, %arg3: memref<8x8x32xf32, #tpu.memory_space<vmem>>, %arg4: memref<32x32xf32, #tpu.memory_space<vmem>>, %arg5: memref<32x32xf32, #tpu.memory_space<vmem>>, %arg6: memref<1x32xf32, #tpu.memory_space<vmem>>, %arg7: memref<1x32xf32, #tpu.memory_space<vmem>>, %arg8: memref<8x1x32xf32, #tpu.memory_space<vmem>>, %arg9: memref<8x1x8xf32, #tpu.memory_space<vmem>>) attributes {dimension_semantics = [#tpu.dimension_semantics<parallel>], iteration_bounds = array<i64: 2>, scalar_prefetch = 0 : i64, scratch_operands = 0 : i64, tpu.core_type = #tpu.core_type<tc>, window_params = [{transform_indices = @transform_0, window_bounds = array<i64: 8, 32>}, {transform_indices = @transform_1, window_bounds = array<i64: 8, 8, 32>}, {transform_indices = @transform_2, window_bounds = array<i64: 8, 8, 32>}, {pipeline_mode = #tpu.pipeline_mode<synchronous>, transform_indices = @transform_3, window_bounds = array<i64: 32, 32>}, {pipeline_mode = #tpu.pipeline_mode<synchronous>, transform_indices = @transform_4, window_bounds = array<i64: 32, 32>}, {pipeline_mode = #tpu.pipeline_mode<synchronous>, transform_indices = @transform_5, window_bounds = array<i64: 1, 32>}, {pipeline_mode = #tpu.pipeline_mode<synchronous>, transform_indices = @transform_6, window_bounds = array<i64: 1, 32>}, {transform_indices = @transform_7, window_bounds = array<i64: 8, 1, 32>}, {transform_indices = @transform_8, window_bounds = array<i64: 8, 1, 8>}]} {
    %c0 = arith.constant 0 : index
    %c0_0 = arith.constant 0 : index
    %0 = vector.load %arg1[%c0, %c0_0] : memref<8x32xf32, #tpu.memory_space<vmem>>, vector<8x32xf32>
    %c0_1 = arith.constant 0 : index
    %c0_2 = arith.constant 0 : index
    %c0_3 = arith.constant 0 : index
    %1 = vector.load %arg2[%c0_1, %c0_2, %c0_3] : memref<8x8x32xf32, #tpu.memory_space<vmem>>, vector<8x8x32xf32>
    %c0_4 = arith.constant 0 : index
    %c0_5 = arith.constant 0 : index
    %c0_6 = arith.constant 0 : index
    %2 = vector.load %arg3[%c0_4, %c0_5, %c0_6] : memref<8x8x32xf32, #tpu.memory_space<vmem>>, vector<8x8x32xf32>
    %c0_7 = arith.constant 0 : index
    %c0_8 = arith.constant 0 : index
    %3 = vector.load %arg4[%c0_7, %c0_8] : memref<32x32xf32, #tpu.memory_space<vmem>>, vector<32x32xf32>
    %cst = arith.constant dense<0.000000e+00> : vector<8x32xf32>
    %4 = tpu.matmul %0, %3, %cst {dimension_numbers = #tpu.dot_dimension_numbers<[1], [0], [0], [1], [0, 0, 1, 1], [], []>} : vector<8x32xf32>, vector<32x32xf32>, vector<8x32xf32> -> vector<8x32xf32>
    %5 = vector.shape_cast %1 : vector<8x8x32xf32> to vector<64x32xf32>
    %c0_9 = arith.constant 0 : index
    %c0_10 = arith.constant 0 : index
    %6 = vector.load %arg5[%c0_9, %c0_10] : memref<32x32xf32, #tpu.memory_space<vmem>>, vector<32x32xf32>
    %cst_11 = arith.constant dense<0.000000e+00> : vector<64x32xf32>
    %7 = tpu.matmul %5, %6, %cst_11 {dimension_numbers = #tpu.dot_dimension_numbers<[1], [0], [0], [1], [0, 0, 1, 1], [], []>} : vector<64x32xf32>, vector<32x32xf32>, vector<64x32xf32> -> vector<64x32xf32>
    %8 = vector.shape_cast %7 : vector<64x32xf32> to vector<8x8x32xf32>
    %9 = vector.shape_cast %4 : vector<8x32xf32> to vector<8x1x32xf32>
    %10 = vector.broadcast %9 : vector<8x1x32xf32> to vector<8x8x32xf32>
    %11 = arith.addf %8, %10 : vector<8x8x32xf32>
    %c0_12 = arith.constant 0 : index
    %c0_13 = arith.constant 0 : index
    %12 = vector.load %arg6[%c0_12, %c0_13] : memref<1x32xf32, #tpu.memory_space<vmem>>, vector<1x32xf32>
    %13 = vector.shape_cast %12 : vector<1x32xf32> to vector<1x1x32xf32>
    %14 = vector.broadcast %13 : vector<1x1x32xf32> to vector<8x8x32xf32>
    %15 = arith.addf %11, %14 : vector<8x8x32xf32>
    %cst_14 = arith.constant 0.000000e+00 : f32
    %16 = vector.broadcast %cst_14 : f32 to vector<8x8x32xf32>
    %17 = arith.maximumf %15, %16 : vector<8x8x32xf32>
    %c0_15 = arith.constant 0 : index
    %c0_16 = arith.constant 0 : index
    %18 = vector.load %arg7[%c0_15, %c0_16] : memref<1x32xf32, #tpu.memory_space<vmem>>, vector<1x32xf32>
    %19 = vector.shape_cast %18 : vector<1x32xf32> to vector<1x1x32xf32>
    %20 = vector.shape_cast %19 : vector<1x1x32xf32> to vector<1x1x32xf32>
    %21 = vector.broadcast %20 : vector<1x1x32xf32> to vector<8x1x32xf32>
    "tpu.trace_start"() <{level = 10 : i32, message = "bqh,bsh->bqs"}> : () -> ()
    %cst_17 = arith.constant dense<0.000000e+00> : vector<8x1x8xf32>
    %22 = tpu.matmul %21, %17, %cst_17 {dimension_numbers = #tpu.dot_dimension_numbers<[2], [2], [1], [1], [0, 0, 0, 1, 1, 1], [0], [0]>} : vector<8x1x32xf32>, vector<8x8x32xf32>, vector<8x1x8xf32> -> vector<8x1x8xf32>
    "tpu.trace_stop"() : () -> ()
    %cst_18 = arith.constant dense<0xFF800000> : vector<8x1xf32>
    %23 = vector.multi_reduction <maximumf>, %22, %cst_18 [2] : vector<8x1x8xf32> to vector<8x1xf32>
    %24 = vector.shape_cast %23 : vector<8x1xf32> to vector<8x1x1xf32>
    %25 = vector.broadcast %24 : vector<8x1x1xf32> to vector<8x1x8xf32>
    %26 = arith.subf %22, %25 : vector<8x1x8xf32>
    %27 = math.exp %26 : vector<8x1x8xf32>
    %cst_19 = arith.constant dense<0.000000e+00> : vector<8x1xf32>
    %28 = vector.multi_reduction <add>, %27, %cst_19 [2] : vector<8x1x8xf32> to vector<8x1xf32>
    %29 = vector.shape_cast %28 : vector<8x1xf32> to vector<8x1x1xf32>
    %30 = tpu.reciprocal %29 : vector<8x1x1xf32> -> vector<8x1x1xf32>
    %31 = vector.broadcast %30 : vector<8x1x1xf32> to vector<8x1x8xf32>
    %32 = arith.mulf %27, %31 : vector<8x1x8xf32>
    "tpu.trace_start"() <{level = 10 : i32, message = "bqs,bsh->bqh"}> : () -> ()
    %cst_20 = arith.constant dense<0.000000e+00> : vector<8x1x32xf32>
    %33 = tpu.matmul %32, %2, %cst_20 {dimension_numbers = #tpu.dot_dimension_numbers<[2], [1], [1], [2], [0, 0, 0, 1, 1, 2], [0], [0]>} : vector<8x1x8xf32>, vector<8x8x32xf32>, vector<8x1x32xf32> -> vector<8x1x32xf32>
    "tpu.trace_stop"() : () -> ()
    %c0_21 = arith.constant 0 : index
    %c0_22 = arith.constant 0 : index
    %c0_23 = arith.constant 0 : index
    %34 = vector.load %arg8[%c0_21, %c0_22, %c0_23] : memref<8x1x32xf32, #tpu.memory_space<vmem>>, vector<8x1x32xf32>
    tpu.vector_store %arg8[%c0_21, %c0_22, %c0_23], %33 {strides = array<i32>} : memref<8x1x32xf32, #tpu.memory_space<vmem>>, vector<8x1x32xf32>,
    %c0_24 = arith.constant 0 : index
    %c0_25 = arith.constant 0 : index
    %c0_26 = arith.constant 0 : index
    %35 = vector.load %arg9[%c0_24, %c0_25, %c0_26] : memref<8x1x8xf32, #tpu.memory_space<vmem>>, vector<8x1x8xf32>
    tpu.vector_store %arg9[%c0_24, %c0_25, %c0_26], %32 {strides = array<i32>} : memref<8x1x8xf32, #tpu.memory_space<vmem>>, vector<8x1x8xf32>,
    return
  }
  func.func @transform_0(%arg0: i32) -> (i32, i32) {
    %c0_i32 = arith.constant 0 : i32
    %c0_i32_0 = arith.constant 0 : i32
    return %arg0, %c0_i32 : i32, i32
  }
  func.func @transform_1(%arg0: i32) -> (i32, i32, i32) {
    %c0_i32 = arith.constant 0 : i32
    %c0_i32_0 = arith.constant 0 : i32
    %c0_i32_1 = arith.constant 0 : i32
    return %arg0, %c0_i32, %c0_i32_0 : i32, i32, i32
  }
  func.func @transform_2(%arg0: i32) -> (i32, i32, i32) {
    %c0_i32 = arith.constant 0 : i32
    %c0_i32_0 = arith.constant 0 : i32
    %c0_i32_1 = arith.constant 0 : i32
    return %arg0, %c0_i32, %c0_i32_0 : i32, i32, i32
  }
  func.func @transform_3(%arg0: i32) -> (i32, i32) {
    %c0_i32 = arith.constant 0 : i32
    %c0_i32_0 = arith.constant 0 : i32
    %c0_i32_1 = arith.constant 0 : i32
    return %c0_i32, %c0_i32_0 : i32, i32
  }
  func.func @transform_4(%arg0: i32) -> (i32, i32) {
    %c0_i32 = arith.constant 0 : i32
    %c0_i32_0 = arith.constant 0 : i32
    %c0_i32_1 = arith.constant 0 : i32
    return %c0_i32, %c0_i32_0 : i32, i32
  }
  func.func @transform_5(%arg0: i32) -> (i32, i32) {
    %c0_i32 = arith.constant 0 : i32
    %c0_i32_0 = arith.constant 0 : i32
    %c0_i32_1 = arith.constant 0 : i32
    return %c0_i32, %c0_i32_0 : i32, i32
  }
  func.func @transform_6(%arg0: i32) -> (i32, i32) {
    %c0_i32 = arith.constant 0 : i32
    %c0_i32_0 = arith.constant 0 : i32
    %c0_i32_1 = arith.constant 0 : i32
    return %c0_i32, %c0_i32_0 : i32, i32
  }
  func.func @transform_7(%arg0: i32) -> (i32, i32, i32) {
    %c0_i32 = arith.constant 0 : i32
    %c0_i32_0 = arith.constant 0 : i32
    %c0_i32_1 = arith.constant 0 : i32
    return %arg0, %c0_i32, %c0_i32_0 : i32, i32, i32
  }
  func.func @transform_8(%arg0: i32) -> (i32, i32, i32) {
    %c0_i32 = arith.constant 0 : i32
    %c0_i32_0 = arith.constant 0 : i32
    %c0_i32_1 = arith.constant 0 : i32
    return %arg0, %c0_i32, %c0_i32_0 : i32, i32, i32
  }
}

</mosaic_0001>

<llo_original>
// kernel: tpu_custom_call.1
$region0: #{tpu_custom_call.1}
  #allocation0 [shape = 'u32[]', space=smem, size = 0x4, offset = 0x4, fixed_abs, tag = 'smem constant byte address 0x4 - core index']
  #allocation1 [shape = 'u32[144,128]{1,0:T(1,128)}', space=vmem, size = 0x12000, scoped, tag = 'internal scratch']
  %s0 = inlined_call_operand.hbm [shape: f32[16,32], index: 0, kind: input, shape index: {}]
  %s1 = inlined_call_operand.hbm [shape: f32[16,8,32], index: 1, kind: input, shape index: {}]
  %s2 = inlined_call_operand.hbm [shape: f32[16,8,32], index: 2, kind: input, shape index: {}]
  %s3 = inlined_call_operand.hbm [shape: f32[32,32], index: 3, kind: input, shape index: {}]
  %s4 = inlined_call_operand.hbm [shape: f32[32,32], index: 4, kind: input, shape index: {}]
  %s5 = inlined_call_operand.vmem [shape: f32[1,32], index: 5, kind: input, shape index: {}]
  %s6 = inlined_call_operand.vmem [shape: f32[1,32], index: 6, kind: input, shape index: {}]
  %s7 = inlined_call_operand.hbm [shape: f32[16,1,32], index: 7, kind: output, shape index: {0}]
  %s8 = inlined_call_operand.vmem [shape: f32[16,1,8], index: 8, kind: output, shape index: {1}]
  %9 = xla_tuple %s7, %s8
  %s10 = sld [smem:[#allocation0]]
  $region89: #{tpu_custom_call.1} parent=0
    _
  %s12 = ssub.s32 1, %s10
  %s13 = scalar_select 0, %s12, %s10
  $region1: #{tpu_custom_call.1} parent=0
    #allocation2 [shape = 'u8[8192]{0}', space=vmem, size = 0x2000, scoped, tag = 'input window, operand 0']
    #allocation3 [shape = 's32[2]{0}', space=sflag, size = 0x8, scoped, tag = 'scoped memory for tpu_custom_call.1']
    #allocation4 [shape = 's32[2]{0}', space=sflag, size = 0x8, scoped, tag = 'scoped memory for tpu_custom_call.1']
    #allocation5 [shape = 'u8[65536]{0}', space=vmem, size = 0x10000, scoped, tag = 'input window, operand 1']
    #allocation6 [shape = 's32[2]{0}', space=sflag, size = 0x8, scoped, tag = 'scoped memory for tpu_custom_call.1']
    #allocation7 [shape = 'u8[65536]{0}', space=vmem, size = 0x10000, scoped, tag = 'input window, operand 2']
    #allocation8 [shape = 'u8[16384]{0}', space=vmem, size = 0x4000, scoped, tag = 'input window, operand 3, single buffered']
    #allocation9 [shape = 's32[1]{0}', space=sflag, size = 0x4, scoped, tag = 'scoped memory for tpu_custom_call.1']
    #allocation10 [shape = 'u8[16384]{0}', space=vmem, size = 0x4000, scoped, tag = 'input window, operand 4, single buffered']
    #allocation11 [shape = 'u8[8192]{0}', space=vmem, size = 0x2000, scoped, tag = 'output window, operand 0']
    %14 = vsyncpa [#allocation3], 0
    %s15 = scalar_lea.sflag [#allocation3], 1
    %16 = vsyncpa %s15, 0
    %17 = vsyncpa [#allocation6], 0
    %s18 = scalar_lea.sflag [#allocation6], 1
    %19 = vsyncpa %s18, 0
    %20 = vsyncpa [#allocation9], 0
    %21 = vsyncpa [#allocation4], 0
    %s22 = scalar_lea.sflag [#allocation4], 1
    %23 = vsyncpa %s22, 0
    loop: start=0, step=1, limit=4
    $region2: #{tpu_custom_call.1} parent=1 // loop_pre_header
      _
    $region3: #{tpu_custom_call.1} parent=1 // loop_header
      %s25 = sphi 0, %s29
      %p26 = scmp.ge.s32.totalorder %s25, 4
      %s35 = sphi 0, %s37
      %s38 = sphi 0, %s35
      %s39 = sphi 0, %s38
      %s55 = sphi 0, %s39
      %s61 = sphi 0, %s63
      %s64 = sphi 0, %s61
      %s65 = sphi 0, %s64
      %s81 = sphi 0, %s65
      %s87 = sphi 0, %s89
      %s90 = sphi 0, %s87
      %s91 = sphi 0, %s90
      %s107 = sphi 0, %s91
      %s111 = sphi 0, %s111
      %s113 = sphi 0, %s111
      %s114 = sphi 0, %s113
      %s128 = sphi 0, %s114
      %s132 = sphi 0, %s132
      %s134 = sphi 0, %s132
      %s135 = sphi 0, %s134
      %s149 = sphi 0, %s135
      %s153 = sphi 0, %s153
      %s155 = sphi 0, %s153
      %s156 = sphi 0, %s155
      %s170 = sphi 0, %s156
      %s174 = sphi 0, %s174
      %s176 = sphi 0, %s174
      %s177 = sphi 0, %s176
      %s191 = sphi 0, %s177
      %s197 = sphi 0, %s199
      %s200 = sphi 0, %s197
      %s201 = sphi 0, %s200
      %s217 = sphi 0, %s201
      %s223 = sphi 0, %s225
      %s226 = sphi 0, %s223
      %s227 = sphi 0, %s226
      %s243 = sphi 0, %s227
    $region4: #{tpu_custom_call.1} parent=1 // loop_header_branch
      %28 = sbr.rel (%p26) target = $region8
    $region5: #{tpu_custom_call.1} parent=1 // loop_body
      %s30 = ssub.s32 %s25, 1
      %s31 = ssub.s32 %s25, 2
      %s32 = sadd.s32 %s25, 1
      %s33 = ssub.s32 %s25, %s32
      %p34 = scmp.eq.s32.totalorder %s33, 0
      %s36 = sadd.s32 %s35, 1
      %s37 = scalar_select %p34, %s35, %s36
      %p40 = pneg %p34
      %p41 = scmp.eq.s32.totalorder %s25, 1
      %p42 = por %p40, %p41
      %p43 = scmp.ne.s32.totalorder %s35, %s38
      %p44 = scmp.eq.s32.totalorder %s25, 0
      %p45 = por %p43, %p44
      %p46 = scmp.ne.s32.totalorder %s35, %s38
      %p47 = scmp.eq.s32.totalorder %s30, 1
      %p48 = por %p46, %p47
      %p49 = scmp.ne.s32.totalorder %s38, %s39
      %p50 = scmp.eq.s32.totalorder %s30, 0
      %p51 = por %p49, %p50
      %p52 = scmp.ne.s32.totalorder %s38, %s39
      %p53 = scmp.eq.s32.totalorder %s31, 1
      %p54 = por %p52, %p53
      %p56 = scmp.ne.s32.totalorder %s39, %s55
      %p57 = scmp.eq.s32.totalorder %s31, 0
      %p58 = por %p56, %p57
      %s59 = ssub.s32 %s25, %s32
      %p60 = scmp.eq.s32.totalorder %s59, 0
      %s62 = sadd.s32 %s61, 1
      %s63 = scalar_select %p60, %s61, %s62
      %p66 = pneg %p60
      %p67 = scmp.eq.s32.totalorder %s25, 1
      %p68 = por %p66, %p67
      %p69 = scmp.ne.s32.totalorder %s61, %s64
      %p70 = scmp.eq.s32.totalorder %s25, 0
      %p71 = por %p69, %p70
      %p72 = scmp.ne.s32.totalorder %s61, %s64
      %p73 = scmp.eq.s32.totalorder %s30, 1
      %p74 = por %p72, %p73
      %p75 = scmp.ne.s32.totalorder %s64, %s65
      %p76 = scmp.eq.s32.totalorder %s30, 0
      %p77 = por %p75, %p76
      %p78 = scmp.ne.s32.totalorder %s64, %s65
      %p79 = scmp.eq.s32.totalorder %s31, 1
      %p80 = por %p78, %p79
      %p82 = scmp.ne.s32.totalorder %s65, %s81
      %p83 = scmp.eq.s32.totalorder %s31, 0
      %p84 = por %p82, %p83
      %s85 = ssub.s32 %s25, %s32
      %p86 = scmp.eq.s32.totalorder %s85, 0
      %s88 = sadd.s32 %s87, 1
      %s89 = scalar_select %p86, %s87, %s88
      %p92 = pneg %p86
      %p93 = scmp.eq.s32.totalorder %s25, 1
      %p94 = por %p92, %p93
      %p95 = scmp.ne.s32.totalorder %s87, %s90
      %p96 = scmp.eq.s32.totalorder %s25, 0
      %p97 = por %p95, %p96
      %p98 = scmp.ne.s32.totalorder %s87, %s90
      %p99 = scmp.eq.s32.totalorder %s30, 1
      %p100 = por %p98, %p99
      %p101 = scmp.ne.s32.totalorder %s90, %s91
      %p102 = scmp.eq.s32.totalorder %s30, 0
      %p103 = por %p101, %p102
      %p104 = scmp.ne.s32.totalorder %s90, %s91
      %p105 = scmp.eq.s32.totalorder %s31, 1
      %p106 = por %p104, %p105
      %p108 = scmp.ne.s32.totalorder %s91, %s107
      %p109 = scmp.eq.s32.totalorder %s31, 0
      %p110 = por %p108, %p109
      %s112 = sadd.s32 %s111, 1
      %p115 = scmp.eq.s32.totalorder %s25, 1
      %p116 = scmp.ne.s32.totalorder %s111, %s113
      %p117 = scmp.eq.s32.totalorder %s25, 0
      %p118 = por %p116, %p117
      %p119 = scmp.ne.s32.totalorder %s111, %s113
      %p120 = scmp.eq.s32.totalorder %s30, 1
      %p121 = por %p119, %p120
      %p122 = scmp.ne.s32.totalorder %s113, %s114
      %p123 = scmp.eq.s32.totalorder %s30, 0
      %p124 = por %p122, %p123
      %p125 = scmp.ne.s32.totalorder %s113, %s114
      %p126 = scmp.eq.s32.totalorder %s31, 1
      %p127 = por %p125, %p126
      %p129 = scmp.ne.s32.totalorder %s114, %s128
      %p130 = scmp.eq.s32.totalorder %s31, 0
      %p131 = por %p129, %p130
      %s133 = sadd.s32 %s132, 1
      %p136 = scmp.eq.s32.totalorder %s25, 1
      %p137 = scmp.ne.s32.totalorder %s132, %s134
      %p138 = scmp.eq.s32.totalorder %s25, 0
      %p139 = por %p137, %p138
      %p140 = scmp.ne.s32.totalorder %s132, %s134
      %p141 = scmp.eq.s32.totalorder %s30, 1
      %p142 = por %p140, %p141
      %p143 = scmp.ne.s32.totalorder %s134, %s135
      %p144 = scmp.eq.s32.totalorder %s30, 0
      %p145 = por %p143, %p144
      %p146 = scmp.ne.s32.totalorder %s134, %s135
      %p147 = scmp.eq.s32.totalorder %s31, 1
      %p148 = por %p146, %p147
      %p150 = scmp.ne.s32.totalorder %s135, %s149
      %p151 = scmp.eq.s32.totalorder %s31, 0
      %p152 = por %p150, %p151
      %s154 = sadd.s32 %s153, 1
      %p157 = scmp.eq.s32.totalorder %s25, 1
      %p158 = scmp.ne.s32.totalorder %s153, %s155
      %p159 = scmp.eq.s32.totalorder %s25, 0
      %p160 = por %p158, %p159
      %p161 = scmp.ne.s32.totalorder %s153, %s155
      %p162 = scmp.eq.s32.totalorder %s30, 1
      %p163 = por %p161, %p162
      %p164 = scmp.ne.s32.totalorder %s155, %s156
      %p165 = scmp.eq.s32.totalorder %s30, 0
      %p166 = por %p164, %p165
      %p167 = scmp.ne.s32.totalorder %s155, %s156
      %p168 = scmp.eq.s32.totalorder %s31, 1
      %p169 = por %p167, %p168
      %p171 = scmp.ne.s32.totalorder %s156, %s170
      %p172 = scmp.eq.s32.totalorder %s31, 0
      %p173 = por %p171, %p172
      %s175 = sadd.s32 %s174, 1
      %p178 = scmp.eq.s32.totalorder %s25, 1
      %p179 = scmp.ne.s32.totalorder %s174, %s176
      %p180 = scmp.eq.s32.totalorder %s25, 0
      %p181 = por %p179, %p180
      %p182 = scmp.ne.s32.totalorder %s174, %s176
      %p183 = scmp.eq.s32.totalorder %s30, 1
      %p184 = por %p182, %p183
      %p185 = scmp.ne.s32.totalorder %s176, %s177
      %p186 = scmp.eq.s32.totalorder %s30, 0
      %p187 = por %p185, %p186
      %p188 = scmp.ne.s32.totalorder %s176, %s177
      %p189 = scmp.eq.s32.totalorder %s31, 1
      %p190 = por %p188, %p189
      %p192 = scmp.ne.s32.totalorder %s177, %s191
      %p193 = scmp.eq.s32.totalorder %s31, 0
      %p194 = por %p192, %p193
      %s195 = ssub.s32 %s25, %s32
      %p196 = scmp.eq.s32.totalorder %s195, 0
      %s198 = sadd.s32 %s197, 1
      %s199 = scalar_select %p196, %s197, %s198
      %p202 = pneg %p196
      %p203 = scmp.eq.s32.totalorder %s25, 1
      %p204 = por %p202, %p203
      %p205 = scmp.ne.s32.totalorder %s197, %s200
      %p206 = scmp.eq.s32.totalorder %s25, 0
      %p207 = por %p205, %p206
      %p208 = scmp.ne.s32.totalorder %s197, %s200
      %p209 = scmp.eq.s32.totalorder %s30, 1
      %p210 = por %p208, %p209
      %p211 = scmp.ne.s32.totalorder %s200, %s201
      %p212 = scmp.eq.s32.totalorder %s30, 0
      %p213 = por %p211, %p212
      %p214 = scmp.ne.s32.totalorder %s200, %s201
      %p215 = scmp.eq.s32.totalorder %s31, 1
      %p216 = por %p214, %p215
      %p218 = scmp.ne.s32.totalorder %s201, %s217
      %p219 = scmp.eq.s32.totalorder %s31, 0
      %p220 = por %p218, %p219
      %s221 = ssub.s32 %s25, %s32
      %p222 = scmp.eq.s32.totalorder %s221, 0
      %s224 = sadd.s32 %s223, 1
      %s225 = scalar_select %p222, %s223, %s224
      %p228 = pneg %p222
      %p229 = scmp.eq.s32.totalorder %s25, 1
      %p230 = por %p228, %p229
      %p231 = scmp.ne.s32.totalorder %s223, %s226
      %p232 = scmp.eq.s32.totalorder %s25, 0
      %p233 = por %p231, %p232
      %p234 = scmp.ne.s32.totalorder %s223, %s226
      %p235 = scmp.eq.s32.totalorder %s30, 1
      %p236 = por %p234, %p235
      %p237 = scmp.ne.s32.totalorder %s226, %s227
      %p238 = scmp.eq.s32.totalorder %s30, 0
      %p239 = por %p237, %p238
      %p240 = scmp.ne.s32.totalorder %s226, %s227
      %p241 = scmp.eq.s32.totalorder %s31, 1
      %p242 = por %p240, %p241
      %p244 = scmp.ne.s32.totalorder %s227, %s243
      %p245 = scmp.eq.s32.totalorder %s31, 0
      %p246 = por %p244, %p245
      %p247 = scmp.le.s32.totalorder 1, %s25
      %p248 = scmp.lt.s32.totalorder %s25, 3
      %p249 = pnand %p247, %p248
      %p250 = pneg %p249
      // Predicated region
      $region9: #{tpu_custom_call.1} parent=5 // pred_check
        _
      $region10: #{tpu_custom_call.1} parent=5 // pred_check_branch
        %252 = sbr.rel (%p249) target = $region12
      $region11: #{tpu_custom_call.1} parent=5 // pred_region
        %s253 = ssub.s32 %s25, 1
        // Predicated region
        $region13: #{tpu_custom_call.1} parent=11 // pred_check
          %p254 = pneg %p124
        $region14: #{tpu_custom_call.1} parent=11 // pred_check_branch
          %256 = sbr.rel (%p254) target = $region16
        $region15: #{tpu_custom_call.1} parent=11 // pred_region
          %s258 = ssub.s32 512, 512
          %259 = vsyncadd [#allocation9], %s258
          %s260 = sshll.u32 [#allocation8], 4
          %s261 = int_to_ptr.vmem [resolvable:$true] %s260
          %266 = dma.hbm_to_vmem [thread:$0]  %s3, 512, %s261, [#allocation9], 128, 128, 8
        $region16: #{tpu_custom_call.1} parent=11 // pred_fallthru
          _
        // Predicated region
        $region17: #{tpu_custom_call.1} parent=11 // pred_check
          %p267 = pneg %p145
        $region18: #{tpu_custom_call.1} parent=11 // pred_check_branch
          %269 = sbr.rel (%p267) target = $region20
        $region19: #{tpu_custom_call.1} parent=11 // pred_region
          %s271 = ssub.s32 512, 512
          %272 = vsyncadd [#allocation9], %s271
          %s273 = sshll.u32 [#allocation10], 4
          %s274 = int_to_ptr.vmem [resolvable:$true] %s273
          %279 = dma.hbm_to_vmem [thread:$0]  %s4, 512, %s274, [#allocation9], 128, 128, 8
        $region20: #{tpu_custom_call.1} parent=11 // pred_fallthru
          _
        // Predicated region
        $region21: #{tpu_custom_call.1} parent=11 // pred_check
          %p280 = pneg %p166
        $region22: #{tpu_custom_call.1} parent=11 // pred_check_branch
          %282 = sbr.rel (%p280) target = $region24
        $region23: #{tpu_custom_call.1} parent=11 // pred_region
          _
        $region24: #{tpu_custom_call.1} parent=11 // pred_fallthru
          _
        // Predicated region
        $region25: #{tpu_custom_call.1} parent=11 // pred_check
          %p283 = pneg %p187
        $region26: #{tpu_custom_call.1} parent=11 // pred_check_branch
          %285 = sbr.rel (%p283) target = $region28
        $region27: #{tpu_custom_call.1} parent=11 // pred_region
          _
        $region28: #{tpu_custom_call.1} parent=11 // pred_fallthru
          _
      $region12: #{tpu_custom_call.1} parent=5 // pred_fallthru
        _
      %p286 = scmp.lt.s32.totalorder %s25, 2
      // Predicated region
      $region29: #{tpu_custom_call.1} parent=5 // pred_check
        %p287 = pneg %p286
      $region30: #{tpu_custom_call.1} parent=5 // pred_check_branch
        %289 = sbr.rel (%p287) target = $region32
      $region31: #{tpu_custom_call.1} parent=5 // pred_region
        // Predicated region
        $region33: #{tpu_custom_call.1} parent=31 // pred_check
          %p290 = pneg %p45
        $region34: #{tpu_custom_call.1} parent=31 // pred_check_branch
          %292 = sbr.rel (%p290) target = $region36
        $region35: #{tpu_custom_call.1} parent=31 // pred_region
          %s293 = sand.u32 %s35, 1
          %s294 = scalar_lea.sflag [#allocation3], %s293
          %s295 = sand.u32 %s35, 1
          %s296 = smul.addr %s295, 8
          %s297 = scalar_lea.vmem [#allocation2], %s296
          %s299 = ssub.s32 128, 128
          %300 = vsyncadd %s294, %s299
          %s301 = smul.addr %s25, 128
          %s302 = scalar_lea.hbm %s0, %s301
          %s304 = sshll.u32 %s297, 4
          %s305 = int_to_ptr.vmem [resolvable:$true] %s304
          %307 = dma.hbm_to_vmem [thread:$0]  %s302, 128, %s305, %s294
        $region36: #{tpu_custom_call.1} parent=31 // pred_fallthru
          _
        // Predicated region
        $region37: #{tpu_custom_call.1} parent=31 // pred_check
          %p308 = pneg %p71
        $region38: #{tpu_custom_call.1} parent=31 // pred_check_branch
          %310 = sbr.rel (%p308) target = $region40
        $region39: #{tpu_custom_call.1} parent=31 // pred_region
          %s311 = sand.u32 %s25, 1
          %s312 = scalar_lea.sflag [#allocation6], %s311
          %s313 = sand.u32 %s61, 1
          %s314 = smul.addr %s313, 64
          %s315 = scalar_lea.vmem [#allocation5], %s314
          %s316 = smul.u32 8, %s25
          %s318 = ssub.s32 1024, 1024
          %319 = vsyncadd %s312, %s318
          %s320 = smul.addr %s316, 128
          %s321 = scalar_lea.hbm %s1, %s320
          %s322 = sshll.u32 %s315, 4
          %s323 = int_to_ptr.vmem [resolvable:$true] %s322
          %328 = dma.hbm_to_vmem [thread:$0]  %s321, 1024, %s323, %s312, 128, 128, 8
        $region40: #{tpu_custom_call.1} parent=31 // pred_fallthru
          _
        // Predicated region
        $region41: #{tpu_custom_call.1} parent=31 // pred_check
          %p329 = pneg %p97
        $region42: #{tpu_custom_call.1} parent=31 // pred_check_branch
          %331 = sbr.rel (%p329) target = $region44
        $region43: #{tpu_custom_call.1} parent=31 // pred_region
          %s332 = sand.u32 %s25, 1
          %s333 = scalar_lea.sflag [#allocation6], %s332
          %s334 = sand.u32 %s87, 1
          %s335 = smul.addr %s334, 64
          %s336 = scalar_lea.vmem [#allocation7], %s335
          %s337 = smul.u32 8, %s25
          %s339 = ssub.s32 1024, 1024
          %340 = vsyncadd %s333, %s339
          %s341 = smul.addr %s337, 128
          %s342 = scalar_lea.hbm %s2, %s341
          %s343 = sshll.u32 %s336, 4
          %s344 = int_to_ptr.vmem [resolvable:$true] %s343
          %349 = dma.hbm_to_vmem [thread:$0]  %s342, 1024, %s344, %s333, 128, 128, 8
        $region44: #{tpu_custom_call.1} parent=31 // pred_fallthru
          _
      $region32: #{tpu_custom_call.1} parent=5 // pred_fallthru
        _
      %p350 = scmp.le.s32.totalorder 1, %s25
      %p351 = scmp.lt.s32.totalorder %s25, 3
      %p352 = pnand %p350, %p351
      %p353 = pneg %p352
      // Predicated region
      $region45: #{tpu_custom_call.1} parent=5 // pred_check
        _
      $region46: #{tpu_custom_call.1} parent=5 // pred_check_branch
        %355 = sbr.rel (%p352) target = $region48
      $region47: #{tpu_custom_call.1} parent=5 // pred_region
        %s356 = ssub.s32 %s25, 1
        %s357 = sand.u32 %s38, 1
        %s358 = scalar_lea.sflag [#allocation3], %s357
        %s359 = sand.u32 %s38, 1
        %s360 = smul.addr %s359, 8
        %s361 = scalar_lea.vmem [#allocation2], %s360
        // Predicated region
        $region49: #{tpu_custom_call.1} parent=47 // pred_check
          %p362 = pneg %p51
        $region50: #{tpu_custom_call.1} parent=47 // pred_check_branch
          %364 = sbr.rel (%p362) target = $region52
        $region51: #{tpu_custom_call.1} parent=47 // pred_region
          %365 = dma.done %s358, 128
        $region52: #{tpu_custom_call.1} parent=47 // pred_fallthru
          _
        %s366 = sand.u32 %s30, 1
        %s367 = scalar_lea.sflag [#allocation6], %s366
        %s368 = sand.u32 %s64, 1
        %s369 = smul.addr %s368, 64
        %s370 = scalar_lea.vmem [#allocation5], %s369
        // Predicated region
        $region53: #{tpu_custom_call.1} parent=47 // pred_check
          %p371 = pneg %p77
        $region54: #{tpu_custom_call.1} parent=47 // pred_check_branch
          %373 = sbr.rel (%p371) target = $region56
        $region55: #{tpu_custom_call.1} parent=47 // pred_region
          %374 = dma.done %s367, 1024
        $region56: #{tpu_custom_call.1} parent=47 // pred_fallthru
          _
        %s375 = sand.u32 %s30, 1
        %s376 = scalar_lea.sflag [#allocation6], %s375
        %s377 = sand.u32 %s90, 1
        %s378 = smul.addr %s377, 64
        %s379 = scalar_lea.vmem [#allocation7], %s378
        // Predicated region
        $region57: #{tpu_custom_call.1} parent=47 // pred_check
          %p380 = pneg %p103
        $region58: #{tpu_custom_call.1} parent=47 // pred_check_branch
          %382 = sbr.rel (%p380) target = $region60
        $region59: #{tpu_custom_call.1} parent=47 // pred_region
          %383 = dma.done %s376, 1024
        $region60: #{tpu_custom_call.1} parent=47 // pred_fallthru
          _
        // Predicated region
        $region61: #{tpu_custom_call.1} parent=47 // pred_check
          %p384 = pneg %p124
        $region62: #{tpu_custom_call.1} parent=47 // pred_check_branch
          %386 = sbr.rel (%p384) target = $region64
        $region63: #{tpu_custom_call.1} parent=47 // pred_region
          %387 = dma.done [#allocation9], 512
        $region64: #{tpu_custom_call.1} parent=47 // pred_fallthru
          _
        // Predicated region
        $region65: #{tpu_custom_call.1} parent=47 // pred_check
          %p388 = pneg %p145
        $region66: #{tpu_custom_call.1} parent=47 // pred_check_branch
          %390 = sbr.rel (%p388) target = $region68
        $region67: #{tpu_custom_call.1} parent=47 // pred_region
          %391 = dma.done [#allocation9], 512
        $region68: #{tpu_custom_call.1} parent=47 // pred_fallthru
          _
        %s392 = sand.u32 %s38, 1
        %s393 = scalar_lea.sflag [#allocation3], %s392
        %s394 = sand.u32 %s38, 1
        %s395 = smul.addr %s394, 8
        %s396 = scalar_lea.vmem [#allocation2], %s395
        %p397 = pneg %p51
        %p398 = pneg %p48
        %s399 = sand.u32 %s30, 1
        %s400 = scalar_lea.sflag [#allocation6], %s399
        %s401 = sand.u32 %s64, 1
        %s402 = smul.addr %s401, 64
        %s403 = scalar_lea.vmem [#allocation5], %s402
        %p404 = pneg %p77
        %p405 = pneg %p74
        %s406 = sand.u32 %s30, 1
        %s407 = scalar_lea.sflag [#allocation6], %s406
        %s408 = sand.u32 %s90, 1
        %s409 = smul.addr %s408, 64
        %s410 = scalar_lea.vmem [#allocation7], %s409
        %p411 = pneg %p103
        %p412 = pneg %p100
        %p413 = pneg %p124
        %p414 = pneg %p121
        %p415 = pneg %p145
        %p416 = pneg %p142
        %p417 = pneg %p166
        %p418 = pneg %p163
        %p419 = pneg %p187
        %p420 = pneg %p184
        %p421 = pneg %p213
        %p422 = pneg %p210
        %s423 = sand.u32 %s200, 1
        %s424 = scalar_lea.sflag [#allocation4], %s423
        %s425 = sand.u32 %s200, 1
        %s426 = smul.addr %s425, 8
        %s427 = scalar_lea.vmem [#allocation11], %s426
        %p428 = pneg %p239
        %p429 = pneg %p236
        %s430 = smul.u32 8, %s30
        %p431 = scmp.lt.s32.totalorder %s430, 15
        %s432 = scalar_select %p431, %s430, 15
        %s433 = scalar_lea.vmem %s8, %s432
        %s434 = smul.u32 8, %s30
        %s435 = smul.u32 8, %s30
        %s436 = smul.u32 8, %s30
        %s437 = smul.u32 8, %s30
        %p438 = scmp.lt.s32.totalorder %s437, 15
        %s439 = scalar_select %p438, %s437, 15
        %s440 = scalar_lea.vmem %s8, %s439
        %s441 = smul.u32 8, %s30
        %v442 = vld [vmem:[%s361] sm:$0xff]
        %v443 = vld [vmem:[%s370] sm:$0xff]
        %v444 = vld [vmem:[%s370 + $0x8] sm:$0xff]
        %v445 = vld [vmem:[%s370 + $0x10] sm:$0xff]
        %v446 = vld [vmem:[%s370 + $0x18] sm:$0xff]
        %v447 = vld [vmem:[%s370 + $0x20] sm:$0xff]
        %v448 = vld [vmem:[%s370 + $0x28] sm:$0xff]
        %v449 = vld [vmem:[%s370 + $0x30] sm:$0xff]
        %v450 = vld [vmem:[%s370 + $0x38] sm:$0xff]
        %v451 = vld [vmem:[%s379] sm:$0xff]
        %v452 = vld [vmem:[%s379 + $0x8] sm:$0xff]
        %v453 = vld [vmem:[%s379 + $0x10] sm:$0xff]
        %v454 = vld [vmem:[%s379 + $0x18] sm:$0xff]
        %v455 = vld [vmem:[%s379 + $0x20] sm:$0xff]
        %v456 = vld [vmem:[%s379 + $0x28] sm:$0xff]
        %v457 = vld [vmem:[%s379 + $0x30] sm:$0xff]
        %v458 = vld [vmem:[%s379 + $0x38] sm:$0xff]
        %v459 = vld [vmem:[#allocation8] sm:$0xff]
        %v460 = vld [vmem:[#allocation8 + $0x8] sm:$0xff]
        %v461 = vld [vmem:[#allocation8 + $0x10] sm:$0xff]
        %v462 = vld [vmem:[#allocation8 + $0x18] sm:$0xff]
        %vm463 = vcmask 261120
        %v465 = vsel %vm463, %v442, 0
        %467 = vmatprep.subr.mxu0 0.0
        %468 = vmatpush1.msra.mxu0 %v459
        %469 = vmatprep.subr.mxu0 0.0
        %470 = vmatpush1.msra.mxu0 %v460
        %471 = vmatprep.subr.mxu0 0.0
        %472 = vmatpush1.msra.mxu0 %v461
        %473 = vmatprep.subr.mxu0 0.0
        %474 = vmatpush1.msra.mxu0 %v462
        %475 = vmatprep.subr.mxu0 0.0
        %476 = vmatpush1.msra.mxu0 0.0
        %477 = vmatprep.subr.mxu0 0.0
        %478 = vmatpush1.msra.mxu0 0.0
        %479 = vmatprep.subr.mxu0 0.0
        %480 = vmatpush1.msra.mxu0 0.0
        %481 = vmatprep.subr.mxu0 0.0
        %482 = vmatpush1.msra.mxu0 0.0
        %483 = vmatprep.subr.mxu0 0.0
        %484 = vmatpush1.msra.mxu0 0.0
        %485 = vmatprep.subr.mxu0 0.0
        %486 = vmatpush1.msra.mxu0 0.0
        %487 = vmatprep.subr.mxu0 0.0
        %488 = vmatpush1.msra.mxu0 0.0
        %489 = vmatprep.subr.mxu0 0.0
        %490 = vmatpush1.msra.mxu0 0.0
        %491 = vmatprep.subr.mxu0 0.0
        %492 = vmatpush1.msra.mxu0 0.0
        %493 = vmatprep.subr.mxu0 0.0
        %494 = vmatpush1.msra.mxu0 0.0
        %495 = vmatprep.subr.mxu0 0.0
        %496 = vmatpush1.msra.mxu0 0.0
        %497 = vmatprep.subr.mxu0 0.0
        %498 = vmatpush1.msra.mxu0 0.0
        %499 = vmatprep.subr.mxu0 0.0
        %500 = vmatpush1.msra.mxu0 0.0
        %501 = vmatprep.subr.mxu0 0.0
        %502 = vmatpush1.msra.mxu0 0.0
        %503 = vmatprep.subr.mxu0 0.0
        %504 = vmatpush1.msra.mxu0 0.0
        %505 = vmatprep.subr.mxu0 0.0
        %506 = vmatpush1.msra.mxu0 0.0
        %507 = vmatprep.subr.mxu0 0.0
        %508 = vmatpush1.msra.mxu0 0.0
        %509 = vmatprep.subr.mxu0 0.0
        %510 = vmatpush1.msra.mxu0 0.0
        %511 = vmatprep.subr.mxu0 0.0
        %512 = vmatpush1.msra.mxu0 0.0
        %513 = vmatprep.subr.mxu0 0.0
        %514 = vmatpush1.msra.mxu0 0.0
        %515 = vmatprep.subr.mxu0 0.0
        %516 = vmatpush1.msra.mxu0 0.0
        %517 = vmatprep.subr.mxu0 0.0
        %518 = vmatpush1.msra.mxu0 0.0
        %519 = vmatprep.subr.mxu0 0.0
        %520 = vmatpush1.msra.mxu0 0.0
        %521 = vmatprep.subr.mxu0 0.0
        %522 = vmatpush1.msra.mxu0 0.0
        %523 = vmatprep.subr.mxu0 0.0
        %524 = vmatpush1.msra.mxu0 0.0
        %525 = vmatprep.subr.mxu0 0.0
        %526 = vmatpush1.msra.mxu0 0.0
        %527 = vmatprep.subr.mxu0 0.0
        %528 = vmatpush1.msra.mxu0 0.0
        %529 = vmatprep.subr.mxu0 0.0
        %530 = vmatpush1.msra.mxu0 0.0
        %531 = vmatprep.mubr.f32.mxu0 0.0
        %532 = vmatmul.mubr.f32.gmra.mrb[0].mxu0 %v465
        %v533 = vpop.f32.mrb[0].mxu0
        %v534 = vadd.f32 0.0, %v533
        %v535 = vpop.f32.mrb[0].mxu0
        %536 = vdwg.mxu0
        %v537 = vld [vmem:[#allocation10] sm:$0xff]
        %v538 = vld [vmem:[#allocation10 + $0x8] sm:$0xff]
        %v539 = vld [vmem:[#allocation10 + $0x10] sm:$0xff]
        %v540 = vld [vmem:[#allocation10 + $0x18] sm:$0xff]
        %v542 = vsel %vm463, %v443, 0
        %v545 = vsel %vm463, %v444, 0
        %v548 = vsel %vm463, %v445, 0
        %v551 = vsel %vm463, %v446, 0
        %v554 = vsel %vm463, %v447, 0
        %v557 = vsel %vm463, %v448, 0
        %v560 = vsel %vm463, %v449, 0
        %v563 = vsel %vm463, %v450, 0
        %565 = vmatprep.subr.mxu0 0.0
        %566 = vmatpush1.msra.mxu0 %v537
        %567 = vmatprep.subr.mxu0 0.0
        %568 = vmatpush1.msra.mxu0 %v538
        %569 = vmatprep.subr.mxu0 0.0
        %570 = vmatpush1.msra.mxu0 %v539
        %571 = vmatprep.subr.mxu0 0.0
        %572 = vmatpush1.msra.mxu0 %v540
        %573 = vmatprep.subr.mxu0 0.0
        %574 = vmatpush1.msra.mxu0 0.0
        %575 = vmatprep.subr.mxu0 0.0
        %576 = vmatpush1.msra.mxu0 0.0
        %577 = vmatprep.subr.mxu0 0.0
        %578 = vmatpush1.msra.mxu0 0.0
        %579 = vmatprep.subr.mxu0 0.0
        %580 = vmatpush1.msra.mxu0 0.0
        %581 = vmatprep.subr.mxu0 0.0
        %582 = vmatpush1.msra.mxu0 0.0
        %583 = vmatprep.subr.mxu0 0.0
        %584 = vmatpush1.msra.mxu0 0.0
        %585 = vmatprep.subr.mxu0 0.0
        %586 = vmatpush1.msra.mxu0 0.0
        %587 = vmatprep.subr.mxu0 0.0
        %588 = vmatpush1.msra.mxu0 0.0
        %589 = vmatprep.subr.mxu0 0.0
        %590 = vmatpush1.msra.mxu0 0.0
        %591 = vmatprep.subr.mxu0 0.0
        %592 = vmatpush1.msra.mxu0 0.0
        %593 = vmatprep.subr.mxu0 0.0
        %594 = vmatpush1.msra.mxu0 0.0
        %595 = vmatprep.subr.mxu0 0.0
        %596 = vmatpush1.msra.mxu0 0.0
        %597 = vmatprep.subr.mxu0 0.0
        %598 = vmatpush1.msra.mxu0 0.0
        %599 = vmatprep.subr.mxu0 0.0
        %600 = vmatpush1.msra.mxu0 0.0
        %601 = vmatprep.subr.mxu0 0.0
        %602 = vmatpush1.msra.mxu0 0.0
        %603 = vmatprep.subr.mxu0 0.0
        %604 = vmatpush1.msra.mxu0 0.0
        %605 = vmatprep.subr.mxu0 0.0
        %606 = vmatpush1.msra.mxu0 0.0
        %607 = vmatprep.subr.mxu0 0.0
        %608 = vmatpush1.msra.mxu0 0.0
        %609 = vmatprep.subr.mxu0 0.0
        %610 = vmatpush1.msra.mxu0 0.0
        %611 = vmatprep.subr.mxu0 0.0
        %612 = vmatpush1.msra.mxu0 0.0
        %613 = vmatprep.subr.mxu0 0.0
        %614 = vmatpush1.msra.mxu0 0.0
        %615 = vmatprep.subr.mxu0 0.0
        %616 = vmatpush1.msra.mxu0 0.0
        %617 = vmatprep.subr.mxu0 0.0
        %618 = vmatpush1.msra.mxu0 0.0
        %619 = vmatprep.subr.mxu0 0.0
        %620 = vmatpush1.msra.mxu0 0.0
        %621 = vmatprep.subr.mxu0 0.0
        %622 = vmatpush1.msra.mxu0 0.0
        %623 = vmatprep.subr.mxu0 0.0
        %624 = vmatpush1.msra.mxu0 0.0
        %625 = vmatprep.subr.mxu0 0.0
        %626 = vmatpush1.msra.mxu0 0.0
        %627 = vmatprep.subr.mxu0 0.0
        %628 = vmatpush1.msra.mxu0 0.0
        %629 = vmatprep.mubr.f32.mxu0 0.0
        %630 = vmatmul.mubr.f32.gmra.mrb[0].mxu0 %v542
        %v631 = vpop.f32.mrb[0].mxu0
        %v632 = vadd.f32 0.0, %v631
        %v633 = vpop.f32.mrb[0].mxu0
        %634 = vmatprep.mubr.f32.mxu0 0.0
        %635 = vmatmul.mubr.f32.gmra.mrb[0].mxu0 %v545
        %v636 = vpop.f32.mrb[0].mxu0
        %v637 = vadd.f32 0.0, %v636
        %v638 = vpop.f32.mrb[0].mxu0
        %639 = vmatprep.mubr.f32.mxu0 0.0
        %640 = vmatmul.mubr.f32.gmra.mrb[0].mxu0 %v548
        %v641 = vpop.f32.mrb[0].mxu0
        %v642 = vadd.f32 0.0, %v641
        %v643 = vpop.f32.mrb[0].mxu0
        %644 = vmatprep.mubr.f32.mxu0 0.0
        %645 = vmatmul.mubr.f32.gmra.mrb[0].mxu0 %v551
        %v646 = vpop.f32.mrb[0].mxu0
        %v647 = vadd.f32 0.0, %v646
        %v648 = vpop.f32.mrb[0].mxu0
        %649 = vmatprep.mubr.f32.mxu0 0.0
        %650 = vmatmul.mubr.f32.gmra.mrb[0].mxu0 %v554
        %v651 = vpop.f32.mrb[0].mxu0
        %v652 = vadd.f32 0.0, %v651
        %v653 = vpop.f32.mrb[0].mxu0
        %654 = vmatprep.mubr.f32.mxu0 0.0
        %655 = vmatmul.mubr.f32.gmra.mrb[0].mxu0 %v557
        %v656 = vpop.f32.mrb[0].mxu0
        %v657 = vadd.f32 0.0, %v656
        %v658 = vpop.f32.mrb[0].mxu0
        %659 = vmatprep.mubr.f32.mxu0 0.0
        %660 = vmatmul.mubr.f32.gmra.mrb[0].mxu0 %v560
        %v661 = vpop.f32.mrb[0].mxu0
        %v662 = vadd.f32 0.0, %v661
        %v663 = vpop.f32.mrb[0].mxu0
        %664 = vmatprep.mubr.f32.mxu0 0.0
        %665 = vmatmul.mubr.f32.gmra.mrb[0].mxu0 %v563
        %v666 = vpop.f32.mrb[0].mxu0
        %v667 = vadd.f32 0.0, %v666
        %v668 = vpop.f32.mrb[0].mxu0
        %669 = vdwg.mxu0
        %v671 = vcombine.high %v534, %v534
        %v673 = vunpack.c.l.s4 1966171168
        %v674 = vunpack.c.0.s8 %v673
        %v675 = vlaneseq
        %v676 = vshrl.u32 %v675, 7
        %v677 = vsub.s32 %v674, %v676
        %v678 = vrot.slane %v534, %v677
        %v680 = vunpack.c.l.s4 1966171168
        %v681 = vunpack.c.0.s8 %v680
        %v682 = vlaneseq
        %v683 = vshrl.u32 %v682, 7
        %v684 = vsub.s32 %v681, %v683
        %v685 = vrot.slane %v671, %v684
        %v686 = vcombine.high %v678, %v678
        %v687 = vcombine.high %v685, %v685
        %v689 = vunpack.c.l.s4 1966171168
        %v690 = vunpack.c.0.s8 %v689
        %v691 = vlaneseq
        %v692 = vshrl.u32 %v691, 7
        %v693 = vsub.s32 %v690, %v692
        %v694 = vrot.slane %v678, %v693
        %v696 = vunpack.c.l.s4 1966171168
        %v697 = vunpack.c.0.s8 %v696
        %v698 = vlaneseq
        %v699 = vshrl.u32 %v698, 7
        %v700 = vsub.s32 %v697, %v699
        %v701 = vrot.slane %v685, %v700
        %v703 = vunpack.c.l.s4 1966171168
        %v704 = vunpack.c.0.s8 %v703
        %v705 = vlaneseq
        %v706 = vshrl.u32 %v705, 7
        %v707 = vsub.s32 %v704, %v706
        %v708 = vrot.slane %v686, %v707
        %v710 = vunpack.c.l.s4 1966171168
        %v711 = vunpack.c.0.s8 %v710
        %v712 = vlaneseq
        %v713 = vshrl.u32 %v712, 7
        %v714 = vsub.s32 %v711, %v713
        %v715 = vrot.slane %v687, %v714
        %v716 = vcombine.high %v694, %v694
        %v717 = vcombine.high %v701, %v701
        %v718 = vcombine.high %v708, %v708
        %v719 = vcombine.high %v715, %v715
        %v720 = vlaneseq
        %v721 = vshrl.u32 %v720, 7
        %v722 = vsub.s32 0, %v721
        %v723 = vrot.slane %v694, %v722
        %v724 = vlaneseq
        %v725 = vshrl.u32 %v724, 7
        %v726 = vsub.s32 0, %v725
        %v727 = vrot.slane %v708, %v726
        %v728 = vlaneseq
        %v729 = vshrl.u32 %v728, 7
        %v730 = vsub.s32 0, %v729
        %v731 = vrot.slane %v716, %v730
        %v732 = vlaneseq
        %v733 = vshrl.u32 %v732, 7
        %v734 = vsub.s32 0, %v733
        %v735 = vrot.slane %v718, %v734
        %v736 = vlaneseq
        %v737 = vshrl.u32 %v736, 7
        %v738 = vsub.s32 0, %v737
        %v739 = vrot.slane %v701, %v738
        %v740 = vlaneseq
        %v741 = vshrl.u32 %v740, 7
        %v742 = vsub.s32 0, %v741
        %v743 = vrot.slane %v715, %v742
        %v744 = vlaneseq
        %v745 = vshrl.u32 %v744, 7
        %v746 = vsub.s32 0, %v745
        %v747 = vrot.slane %v717, %v746
        %v748 = vlaneseq
        %v749 = vshrl.u32 %v748, 7
        %v750 = vsub.s32 0, %v749
        %v751 = vrot.slane %v719, %v750
        %v760 = vadd.f32 %v632, %v723
        %v761 = vadd.f32 %v637, %v727
        %v762 = vadd.f32 %v642, %v731
        %v763 = vadd.f32 %v647, %v735
        %v764 = vadd.f32 %v652, %v739
        %v765 = vadd.f32 %v657, %v743
        %v766 = vadd.f32 %v662, %v747
        %v767 = vadd.f32 %v667, %v751
        %v768 = vld [vmem:[%s5] sm:$0x1]
        %v770 = vlaneseq
        %v771 = vshrl.u32 %v770, 7
        %v772 = vsub.s32 0, %v771
        %v773 = vrot.slane %v768, %v772
        %v775 = vadd.f32 %v760, %v773
        %v776 = vadd.f32 %v761, %v773
        %v777 = vadd.f32 %v762, %v773
        %v778 = vadd.f32 %v763, %v773
        %v779 = vadd.f32 %v764, %v773
        %v780 = vadd.f32 %v765, %v773
        %v781 = vadd.f32 %v766, %v773
        %v782 = vadd.f32 %v767, %v773
        %v783 = vmax.f32 %v775, 0.0
        %v784 = vmax.f32 %v776, 0.0
        %v785 = vmax.f32 %v777, 0.0
        %v786 = vmax.f32 %v778, 0.0
        %v787 = vmax.f32 %v779, 0.0
        %v788 = vmax.f32 %v780, 0.0
        %v789 = vmax.f32 %v781, 0.0
        %v790 = vmax.f32 %v782, 0.0
        %v791 = vld [vmem:[%s6] sm:$0x1]
        %v793 = vsel %vm463, %v791, 0
        %v796 = vsel %vm463, %v783, 0
        %798 = vmatprep.subr.mxu0 0.0
        %799 = vmatpush1.xpose.msra.mxu0 %v796
        %800 = vmatprep.subr.mxu0 0.0
        %801 = vmatpush1.xpose.msra.mxu0 0.0
        %802 = vmatprep.subr.mxu0 0.0
        %803 = vmatpush1.xpose.msra.mxu0 0.0
        %804 = vmatprep.subr.mxu0 0.0
        %805 = vmatpush1.xpose.msra.mxu0 0.0
        %806 = vmatprep.subr.mxu0 0.0
        %807 = vmatpush1.xpose.msra.mxu0 0.0
        %808 = vmatprep.subr.mxu0 0.0
        %809 = vmatpush1.xpose.msra.mxu0 0.0
        %810 = vmatprep.subr.mxu0 0.0
        %811 = vmatpush1.xpose.msra.mxu0 0.0
        %812 = vmatprep.subr.mxu0 0.0
        %813 = vmatpush1.xpose.msra.mxu0 0.0
        %814 = vmatprep.subr.mxu0 0.0
        %815 = vmatpush1.xpose.msra.mxu0 0.0
        %816 = vmatprep.subr.mxu0 0.0
        %817 = vmatpush1.xpose.msra.mxu0 0.0
        %818 = vmatprep.subr.mxu0 0.0
        %819 = vmatpush1.xpose.msra.mxu0 0.0
        %820 = vmatprep.subr.mxu0 0.0
        %821 = vmatpush1.xpose.msra.mxu0 0.0
        %822 = vmatprep.subr.mxu0 0.0
        %823 = vmatpush1.xpose.msra.mxu0 0.0
        %824 = vmatprep.subr.mxu0 0.0
        %825 = vmatpush1.xpose.msra.mxu0 0.0
        %826 = vmatprep.subr.mxu0 0.0
        %827 = vmatpush1.xpose.msra.mxu0 0.0
        %828 = vmatprep.subr.mxu0 0.0
        %829 = vmatpush1.xpose.msra.mxu0 0.0
        %830 = vmatprep.subr.mxu0 0.0
        %831 = vmatpush1.xpose.msra.mxu0 0.0
        %832 = vmatprep.subr.mxu0 0.0
        %833 = vmatpush1.xpose.msra.mxu0 0.0
        %834 = vmatprep.subr.mxu0 0.0
        %835 = vmatpush1.xpose.msra.mxu0 0.0
        %836 = vmatprep.subr.mxu0 0.0
        %837 = vmatpush1.xpose.msra.mxu0 0.0
        %838 = vmatprep.subr.mxu0 0.0
        %839 = vmatpush1.xpose.msra.mxu0 0.0
        %840 = vmatprep.subr.mxu0 0.0
        %841 = vmatpush1.xpose.msra.mxu0 0.0
        %842 = vmatprep.subr.mxu0 0.0
        %843 = vmatpush1.xpose.msra.mxu0 0.0
        %844 = vmatprep.subr.mxu0 0.0
        %845 = vmatpush1.xpose.msra.mxu0 0.0
        %846 = vmatprep.subr.mxu0 0.0
        %847 = vmatpush1.xpose.msra.mxu0 0.0
        %848 = vmatprep.subr.mxu0 0.0
        %849 = vmatpush1.xpose.msra.mxu0 0.0
        %850 = vmatprep.subr.mxu0 0.0
        %851 = vmatpush1.xpose.msra.mxu0 0.0
        %852 = vmatprep.subr.mxu0 0.0
        %853 = vmatpush1.xpose.msra.mxu0 0.0
        %854 = vmatprep.subr.mxu0 0.0
        %855 = vmatpush1.xpose.msra.mxu0 0.0
        %856 = vmatprep.subr.mxu0 0.0
        %857 = vmatpush1.xpose.msra.mxu0 0.0
        %858 = vmatprep.subr.mxu0 0.0
        %859 = vmatpush1.xpose.msra.mxu0 0.0
        %860 = vmatprep.subr.mxu0 0.0
        %861 = vmatpush1.xpose.msra.mxu0 0.0
        %862 = vmatprep.mubr.f32.mxu0 0.0
        %863 = vmatmul.mubr.f32.gmra.mrb[0].mxu0 %v793
        %v864 = vpop.f32.mrb[0].mxu0
        %v865 = vadd.f32 0.0, %v864
        %v866 = vpop.f32.mrb[0].mxu0
        %867 = vdwg.mxu0
        %v869 = vsel %vm463, %v784, 0
        %871 = vmatprep.subr.mxu0 0.0
        %872 = vmatpush1.xpose.msra.mxu0 %v869
        %873 = vmatprep.subr.mxu0 0.0
        %874 = vmatpush1.xpose.msra.mxu0 0.0
        %875 = vmatprep.subr.mxu0 0.0
        %876 = vmatpush1.xpose.msra.mxu0 0.0
        %877 = vmatprep.subr.mxu0 0.0
        %878 = vmatpush1.xpose.msra.mxu0 0.0
        %879 = vmatprep.subr.mxu0 0.0
        %880 = vmatpush1.xpose.msra.mxu0 0.0
        %881 = vmatprep.subr.mxu0 0.0
        %882 = vmatpush1.xpose.msra.mxu0 0.0
        %883 = vmatprep.subr.mxu0 0.0
        %884 = vmatpush1.xpose.msra.mxu0 0.0
        %885 = vmatprep.subr.mxu0 0.0
        %886 = vmatpush1.xpose.msra.mxu0 0.0
        %887 = vmatprep.subr.mxu0 0.0
        %888 = vmatpush1.xpose.msra.mxu0 0.0
        %889 = vmatprep.subr.mxu0 0.0
        %890 = vmatpush1.xpose.msra.mxu0 0.0
        %891 = vmatprep.subr.mxu0 0.0
        %892 = vmatpush1.xpose.msra.mxu0 0.0
        %893 = vmatprep.subr.mxu0 0.0
        %894 = vmatpush1.xpose.msra.mxu0 0.0
        %895 = vmatprep.subr.mxu0 0.0
        %896 = vmatpush1.xpose.msra.mxu0 0.0
        %897 = vmatprep.subr.mxu0 0.0
        %898 = vmatpush1.xpose.msra.mxu0 0.0
        %899 = vmatprep.subr.mxu0 0.0
        %900 = vmatpush1.xpose.msra.mxu0 0.0
        %901 = vmatprep.subr.mxu0 0.0
        %902 = vmatpush1.xpose.msra.mxu0 0.0
        %903 = vmatprep.subr.mxu0 0.0
        %904 = vmatpush1.xpose.msra.mxu0 0.0
        %905 = vmatprep.subr.mxu0 0.0
        %906 = vmatpush1.xpose.msra.mxu0 0.0
        %907 = vmatprep.subr.mxu0 0.0
        %908 = vmatpush1.xpose.msra.mxu0 0.0
        %909 = vmatprep.subr.mxu0 0.0
        %910 = vmatpush1.xpose.msra.mxu0 0.0
        %911 = vmatprep.subr.mxu0 0.0
        %912 = vmatpush1.xpose.msra.mxu0 0.0
        %913 = vmatprep.subr.mxu0 0.0
        %914 = vmatpush1.xpose.msra.mxu0 0.0
        %915 = vmatprep.subr.mxu0 0.0
        %916 = vmatpush1.xpose.msra.mxu0 0.0
        %917 = vmatprep.subr.mxu0 0.0
        %918 = vmatpush1.xpose.msra.mxu0 0.0
        %919 = vmatprep.subr.mxu0 0.0
        %920 = vmatpush1.xpose.msra.mxu0 0.0
        %921 = vmatprep.subr.mxu0 0.0
        %922 = vmatpush1.xpose.msra.mxu0 0.0
        %923 = vmatprep.subr.mxu0 0.0
        %924 = vmatpush1.xpose.msra.mxu0 0.0
        %925 = vmatprep.subr.mxu0 0.0
        %926 = vmatpush1.xpose.msra.mxu0 0.0
        %927 = vmatprep.subr.mxu0 0.0
        %928 = vmatpush1.xpose.msra.mxu0 0.0
        %929 = vmatprep.subr.mxu0 0.0
        %930 = vmatpush1.xpose.msra.mxu0 0.0
        %931 = vmatprep.subr.mxu0 0.0
        %932 = vmatpush1.xpose.msra.mxu0 0.0
        %933 = vmatprep.subr.mxu0 0.0
        %934 = vmatpush1.xpose.msra.mxu0 0.0
        %935 = vmatprep.mubr.f32.mxu0 0.0
        %936 = vmatmul.mubr.f32.gmra.mrb[0].mxu0 %v793
        %v937 = vpop.f32.mrb[0].mxu0
        %v938 = vadd.f32 0.0, %v937
        %v939 = vpop.f32.mrb[0].mxu0
        %940 = vdwg.mxu0
        %v942 = vsel %vm463, %v785, 0
        %944 = vmatprep.subr.mxu0 0.0
        %945 = vmatpush1.xpose.msra.mxu0 %v942
        %946 = vmatprep.subr.mxu0 0.0
        %947 = vmatpush1.xpose.msra.mxu0 0.0
        %948 = vmatprep.subr.mxu0 0.0
        %949 = vmatpush1.xpose.msra.mxu0 0.0
        %950 = vmatprep.subr.mxu0 0.0
        %951 = vmatpush1.xpose.msra.mxu0 0.0
        %952 = vmatprep.subr.mxu0 0.0
        %953 = vmatpush1.xpose.msra.mxu0 0.0
        %954 = vmatprep.subr.mxu0 0.0
        %955 = vmatpush1.xpose.msra.mxu0 0.0
        %956 = vmatprep.subr.mxu0 0.0
        %957 = vmatpush1.xpose.msra.mxu0 0.0
        %958 = vmatprep.subr.mxu0 0.0
        %959 = vmatpush1.xpose.msra.mxu0 0.0
        %960 = vmatprep.subr.mxu0 0.0
        %961 = vmatpush1.xpose.msra.mxu0 0.0
        %962 = vmatprep.subr.mxu0 0.0
        %963 = vmatpush1.xpose.msra.mxu0 0.0
        %964 = vmatprep.subr.mxu0 0.0
        %965 = vmatpush1.xpose.msra.mxu0 0.0
        %966 = vmatprep.subr.mxu0 0.0
        %967 = vmatpush1.xpose.msra.mxu0 0.0
        %968 = vmatprep.subr.mxu0 0.0
        %969 = vmatpush1.xpose.msra.mxu0 0.0
        %970 = vmatprep.subr.mxu0 0.0
        %971 = vmatpush1.xpose.msra.mxu0 0.0
        %972 = vmatprep.subr.mxu0 0.0
        %973 = vmatpush1.xpose.msra.mxu0 0.0
        %974 = vmatprep.subr.mxu0 0.0
        %975 = vmatpush1.xpose.msra.mxu0 0.0
        %976 = vmatprep.subr.mxu0 0.0
        %977 = vmatpush1.xpose.msra.mxu0 0.0
        %978 = vmatprep.subr.mxu0 0.0
        %979 = vmatpush1.xpose.msra.mxu0 0.0
        %980 = vmatprep.subr.mxu0 0.0
        %981 = vmatpush1.xpose.msra.mxu0 0.0
        %982 = vmatprep.subr.mxu0 0.0
        %983 = vmatpush1.xpose.msra.mxu0 0.0
        %984 = vmatprep.subr.mxu0 0.0
        %985 = vmatpush1.xpose.msra.mxu0 0.0
        %986 = vmatprep.subr.mxu0 0.0
        %987 = vmatpush1.xpose.msra.mxu0 0.0
        %988 = vmatprep.subr.mxu0 0.0
        %989 = vmatpush1.xpose.msra.mxu0 0.0
        %990 = vmatprep.subr.mxu0 0.0
        %991 = vmatpush1.xpose.msra.mxu0 0.0
        %992 = vmatprep.subr.mxu0 0.0
        %993 = vmatpush1.xpose.msra.mxu0 0.0
        %994 = vmatprep.subr.mxu0 0.0
        %995 = vmatpush1.xpose.msra.mxu0 0.0
        %996 = vmatprep.subr.mxu0 0.0
        %997 = vmatpush1.xpose.msra.mxu0 0.0
        %998 = vmatprep.subr.mxu0 0.0
        %999 = vmatpush1.xpose.msra.mxu0 0.0
        %1000 = vmatprep.subr.mxu0 0.0
        %1001 = vmatpush1.xpose.msra.mxu0 0.0
        %1002 = vmatprep.subr.mxu0 0.0
        %1003 = vmatpush1.xpose.msra.mxu0 0.0
        %1004 = vmatprep.subr.mxu0 0.0
        %1005 = vmatpush1.xpose.msra.mxu0 0.0
        %1006 = vmatprep.subr.mxu0 0.0
        %1007 = vmatpush1.xpose.msra.mxu0 0.0
        %1008 = vmatprep.mubr.f32.mxu0 0.0
        %1009 = vmatmul.mubr.f32.gmra.mrb[0].mxu0 %v793
        %v1010 = vpop.f32.mrb[0].mxu0
        %v1011 = vadd.f32 0.0, %v1010
        %v1012 = vpop.f32.mrb[0].mxu0
        %1013 = vdwg.mxu0
        %v1015 = vsel %vm463, %v786, 0
        %1017 = vmatprep.subr.mxu0 0.0
        %1018 = vmatpush1.xpose.msra.mxu0 %v1015
        %1019 = vmatprep.subr.mxu0 0.0
        %1020 = vmatpush1.xpose.msra.mxu0 0.0
        %1021 = vmatprep.subr.mxu0 0.0
        %1022 = vmatpush1.xpose.msra.mxu0 0.0
        %1023 = vmatprep.subr.mxu0 0.0
        %1024 = vmatpush1.xpose.msra.mxu0 0.0
        %1025 = vmatprep.subr.mxu0 0.0
        %1026 = vmatpush1.xpose.msra.mxu0 0.0
        %1027 = vmatprep.subr.mxu0 0.0
        %1028 = vmatpush1.xpose.msra.mxu0 0.0
        %1029 = vmatprep.subr.mxu0 0.0
        %1030 = vmatpush1.xpose.msra.mxu0 0.0
        %1031 = vmatprep.subr.mxu0 0.0
        %1032 = vmatpush1.xpose.msra.mxu0 0.0
        %1033 = vmatprep.subr.mxu0 0.0
        %1034 = vmatpush1.xpose.msra.mxu0 0.0
        %1035 = vmatprep.subr.mxu0 0.0
        %1036 = vmatpush1.xpose.msra.mxu0 0.0
        %1037 = vmatprep.subr.mxu0 0.0
        %1038 = vmatpush1.xpose.msra.mxu0 0.0
        %1039 = vmatprep.subr.mxu0 0.0
        %1040 = vmatpush1.xpose.msra.mxu0 0.0
        %1041 = vmatprep.subr.mxu0 0.0
        %1042 = vmatpush1.xpose.msra.mxu0 0.0
        %1043 = vmatprep.subr.mxu0 0.0
        %1044 = vmatpush1.xpose.msra.mxu0 0.0
        %1045 = vmatprep.subr.mxu0 0.0
        %1046 = vmatpush1.xpose.msra.mxu0 0.0
        %1047 = vmatprep.subr.mxu0 0.0
        %1048 = vmatpush1.xpose.msra.mxu0 0.0
        %1049 = vmatprep.subr.mxu0 0.0
        %1050 = vmatpush1.xpose.msra.mxu0 0.0
        %1051 = vmatprep.subr.mxu0 0.0
        %1052 = vmatpush1.xpose.msra.mxu0 0.0
        %1053 = vmatprep.subr.mxu0 0.0
        %1054 = vmatpush1.xpose.msra.mxu0 0.0
        %1055 = vmatprep.subr.mxu0 0.0
        %1056 = vmatpush1.xpose.msra.mxu0 0.0
        %1057 = vmatprep.subr.mxu0 0.0
        %1058 = vmatpush1.xpose.msra.mxu0 0.0
        %1059 = vmatprep.subr.mxu0 0.0
        %1060 = vmatpush1.xpose.msra.mxu0 0.0
        %1061 = vmatprep.subr.mxu0 0.0
        %1062 = vmatpush1.xpose.msra.mxu0 0.0
        %1063 = vmatprep.subr.mxu0 0.0
        %1064 = vmatpush1.xpose.msra.mxu0 0.0
        %1065 = vmatprep.subr.mxu0 0.0
        %1066 = vmatpush1.xpose.msra.mxu0 0.0
        %1067 = vmatprep.subr.mxu0 0.0
        %1068 = vmatpush1.xpose.msra.mxu0 0.0
        %1069 = vmatprep.subr.mxu0 0.0
        %1070 = vmatpush1.xpose.msra.mxu0 0.0
        %1071 = vmatprep.subr.mxu0 0.0
        %1072 = vmatpush1.xpose.msra.mxu0 0.0
        %1073 = vmatprep.subr.mxu0 0.0
        %1074 = vmatpush1.xpose.msra.mxu0 0.0
        %1075 = vmatprep.subr.mxu0 0.0
        %1076 = vmatpush1.xpose.msra.mxu0 0.0
        %1077 = vmatprep.subr.mxu0 0.0
        %1078 = vmatpush1.xpose.msra.mxu0 0.0
        %1079 = vmatprep.subr.mxu0 0.0
        %1080 = vmatpush1.xpose.msra.mxu0 0.0
        %1081 = vmatprep.mubr.f32.mxu0 0.0
        %1082 = vmatmul.mubr.f32.gmra.mrb[0].mxu0 %v793
        %v1083 = vpop.f32.mrb[0].mxu0
        %v1084 = vadd.f32 0.0, %v1083
        %v1085 = vpop.f32.mrb[0].mxu0
        %1086 = vdwg.mxu0
        %v1088 = vsel %vm463, %v787, 0
        %1090 = vmatprep.subr.mxu0 0.0
        %1091 = vmatpush1.xpose.msra.mxu0 %v1088
        %1092 = vmatprep.subr.mxu0 0.0
        %1093 = vmatpush1.xpose.msra.mxu0 0.0
        %1094 = vmatprep.subr.mxu0 0.0
        %1095 = vmatpush1.xpose.msra.mxu0 0.0
        %1096 = vmatprep.subr.mxu0 0.0
        %1097 = vmatpush1.xpose.msra.mxu0 0.0
        %1098 = vmatprep.subr.mxu0 0.0
        %1099 = vmatpush1.xpose.msra.mxu0 0.0
        %1100 = vmatprep.subr.mxu0 0.0
        %1101 = vmatpush1.xpose.msra.mxu0 0.0
        %1102 = vmatprep.subr.mxu0 0.0
        %1103 = vmatpush1.xpose.msra.mxu0 0.0
        %1104 = vmatprep.subr.mxu0 0.0
        %1105 = vmatpush1.xpose.msra.mxu0 0.0
        %1106 = vmatprep.subr.mxu0 0.0
        %1107 = vmatpush1.xpose.msra.mxu0 0.0
        %1108 = vmatprep.subr.mxu0 0.0
        %1109 = vmatpush1.xpose.msra.mxu0 0.0
        %1110 = vmatprep.subr.mxu0 0.0
        %1111 = vmatpush1.xpose.msra.mxu0 0.0
        %1112 = vmatprep.subr.mxu0 0.0
        %1113 = vmatpush1.xpose.msra.mxu0 0.0
        %1114 = vmatprep.subr.mxu0 0.0
        %1115 = vmatpush1.xpose.msra.mxu0 0.0
        %1116 = vmatprep.subr.mxu0 0.0
        %1117 = vmatpush1.xpose.msra.mxu0 0.0
        %1118 = vmatprep.subr.mxu0 0.0
        %1119 = vmatpush1.xpose.msra.mxu0 0.0
        %1120 = vmatprep.subr.mxu0 0.0
        %1121 = vmatpush1.xpose.msra.mxu0 0.0
        %1122 = vmatprep.subr.mxu0 0.0
        %1123 = vmatpush1.xpose.msra.mxu0 0.0
        %1124 = vmatprep.subr.mxu0 0.0
        %1125 = vmatpush1.xpose.msra.mxu0 0.0
        %1126 = vmatprep.subr.mxu0 0.0
        %1127 = vmatpush1.xpose.msra.mxu0 0.0
        %1128 = vmatprep.subr.mxu0 0.0
        %1129 = vmatpush1.xpose.msra.mxu0 0.0
        %1130 = vmatprep.subr.mxu0 0.0
        %1131 = vmatpush1.xpose.msra.mxu0 0.0
        %1132 = vmatprep.subr.mxu0 0.0
        %1133 = vmatpush1.xpose.msra.mxu0 0.0
        %1134 = vmatprep.subr.mxu0 0.0
        %1135 = vmatpush1.xpose.msra.mxu0 0.0
        %1136 = vmatprep.subr.mxu0 0.0
        %1137 = vmatpush1.xpose.msra.mxu0 0.0
        %1138 = vmatprep.subr.mxu0 0.0
        %1139 = vmatpush1.xpose.msra.mxu0 0.0
        %1140 = vmatprep.subr.mxu0 0.0
        %1141 = vmatpush1.xpose.msra.mxu0 0.0
        %1142 = vmatprep.subr.mxu0 0.0
        %1143 = vmatpush1.xpose.msra.mxu0 0.0
        %1144 = vmatprep.subr.mxu0 0.0
        %1145 = vmatpush1.xpose.msra.mxu0 0.0
        %1146 = vmatprep.subr.mxu0 0.0
        %1147 = vmatpush1.xpose.msra.mxu0 0.0
        %1148 = vmatprep.subr.mxu0 0.0
        %1149 = vmatpush1.xpose.msra.mxu0 0.0
        %1150 = vmatprep.subr.mxu0 0.0
        %1151 = vmatpush1.xpose.msra.mxu0 0.0
        %1152 = vmatprep.subr.mxu0 0.0
        %1153 = vmatpush1.xpose.msra.mxu0 0.0
        %1154 = vmatprep.mubr.f32.mxu0 0.0
        %1155 = vmatmul.mubr.f32.gmra.mrb[0].mxu0 %v793
        %v1156 = vpop.f32.mrb[0].mxu0
        %v1157 = vadd.f32 0.0, %v1156
        %v1158 = vpop.f32.mrb[0].mxu0
        %1159 = vdwg.mxu0
        %v1161 = vsel %vm463, %v788, 0
        %1163 = vmatprep.subr.mxu0 0.0
        %1164 = vmatpush1.xpose.msra.mxu0 %v1161
        %1165 = vmatprep.subr.mxu0 0.0
        %1166 = vmatpush1.xpose.msra.mxu0 0.0
        %1167 = vmatprep.subr.mxu0 0.0
        %1168 = vmatpush1.xpose.msra.mxu0 0.0
        %1169 = vmatprep.subr.mxu0 0.0
        %1170 = vmatpush1.xpose.msra.mxu0 0.0
        %1171 = vmatprep.subr.mxu0 0.0
        %1172 = vmatpush1.xpose.msra.mxu0 0.0
        %1173 = vmatprep.subr.mxu0 0.0
        %1174 = vmatpush1.xpose.msra.mxu0 0.0
        %1175 = vmatprep.subr.mxu0 0.0
        %1176 = vmatpush1.xpose.msra.mxu0 0.0
        %1177 = vmatprep.subr.mxu0 0.0
        %1178 = vmatpush1.xpose.msra.mxu0 0.0
        %1179 = vmatprep.subr.mxu0 0.0
        %1180 = vmatpush1.xpose.msra.mxu0 0.0
        %1181 = vmatprep.subr.mxu0 0.0
        %1182 = vmatpush1.xpose.msra.mxu0 0.0
        %1183 = vmatprep.subr.mxu0 0.0
        %1184 = vmatpush1.xpose.msra.mxu0 0.0
        %1185 = vmatprep.subr.mxu0 0.0
        %1186 = vmatpush1.xpose.msra.mxu0 0.0
        %1187 = vmatprep.subr.mxu0 0.0
        %1188 = vmatpush1.xpose.msra.mxu0 0.0
        %1189 = vmatprep.subr.mxu0 0.0
        %1190 = vmatpush1.xpose.msra.mxu0 0.0
        %1191 = vmatprep.subr.mxu0 0.0
        %1192 = vmatpush1.xpose.msra.mxu0 0.0
        %1193 = vmatprep.subr.mxu0 0.0
        %1194 = vmatpush1.xpose.msra.mxu0 0.0
        %1195 = vmatprep.subr.mxu0 0.0
        %1196 = vmatpush1.xpose.msra.mxu0 0.0
        %1197 = vmatprep.subr.mxu0 0.0
        %1198 = vmatpush1.xpose.msra.mxu0 0.0
        %1199 = vmatprep.subr.mxu0 0.0
        %1200 = vmatpush1.xpose.msra.mxu0 0.0
        %1201 = vmatprep.subr.mxu0 0.0
        %1202 = vmatpush1.xpose.msra.mxu0 0.0
        %1203 = vmatprep.subr.mxu0 0.0
        %1204 = vmatpush1.xpose.msra.mxu0 0.0
        %1205 = vmatprep.subr.mxu0 0.0
        %1206 = vmatpush1.xpose.msra.mxu0 0.0
        %1207 = vmatprep.subr.mxu0 0.0
        %1208 = vmatpush1.xpose.msra.mxu0 0.0
        %1209 = vmatprep.subr.mxu0 0.0
        %1210 = vmatpush1.xpose.msra.mxu0 0.0
        %1211 = vmatprep.subr.mxu0 0.0
        %1212 = vmatpush1.xpose.msra.mxu0 0.0
        %1213 = vmatprep.subr.mxu0 0.0
        %1214 = vmatpush1.xpose.msra.mxu0 0.0
        %1215 = vmatprep.subr.mxu0 0.0
        %1216 = vmatpush1.xpose.msra.mxu0 0.0
        %1217 = vmatprep.subr.mxu0 0.0
        %1218 = vmatpush1.xpose.msra.mxu0 0.0
        %1219 = vmatprep.subr.mxu0 0.0
        %1220 = vmatpush1.xpose.msra.mxu0 0.0
        %1221 = vmatprep.subr.mxu0 0.0
        %1222 = vmatpush1.xpose.msra.mxu0 0.0
        %1223 = vmatprep.subr.mxu0 0.0
        %1224 = vmatpush1.xpose.msra.mxu0 0.0
        %1225 = vmatprep.subr.mxu0 0.0
        %1226 = vmatpush1.xpose.msra.mxu0 0.0
        %1227 = vmatprep.mubr.f32.mxu0 0.0
        %1228 = vmatmul.mubr.f32.gmra.mrb[0].mxu0 %v793
        %v1229 = vpop.f32.mrb[0].mxu0
        %v1230 = vadd.f32 0.0, %v1229
        %v1231 = vpop.f32.mrb[0].mxu0
        %1232 = vdwg.mxu0
        %v1234 = vsel %vm463, %v789, 0
        %1236 = vmatprep.subr.mxu0 0.0
        %1237 = vmatpush1.xpose.msra.mxu0 %v1234
        %1238 = vmatprep.subr.mxu0 0.0
        %1239 = vmatpush1.xpose.msra.mxu0 0.0
        %1240 = vmatprep.subr.mxu0 0.0
        %1241 = vmatpush1.xpose.msra.mxu0 0.0
        %1242 = vmatprep.subr.mxu0 0.0
        %1243 = vmatpush1.xpose.msra.mxu0 0.0
        %1244 = vmatprep.subr.mxu0 0.0
        %1245 = vmatpush1.xpose.msra.mxu0 0.0
        %1246 = vmatprep.subr.mxu0 0.0
        %1247 = vmatpush1.xpose.msra.mxu0 0.0
        %1248 = vmatprep.subr.mxu0 0.0
        %1249 = vmatpush1.xpose.msra.mxu0 0.0
        %1250 = vmatprep.subr.mxu0 0.0
        %1251 = vmatpush1.xpose.msra.mxu0 0.0
        %1252 = vmatprep.subr.mxu0 0.0
        %1253 = vmatpush1.xpose.msra.mxu0 0.0
        %1254 = vmatprep.subr.mxu0 0.0
        %1255 = vmatpush1.xpose.msra.mxu0 0.0
        %1256 = vmatprep.subr.mxu0 0.0
        %1257 = vmatpush1.xpose.msra.mxu0 0.0
        %1258 = vmatprep.subr.mxu0 0.0
        %1259 = vmatpush1.xpose.msra.mxu0 0.0
        %1260 = vmatprep.subr.mxu0 0.0
        %1261 = vmatpush1.xpose.msra.mxu0 0.0
        %1262 = vmatprep.subr.mxu0 0.0
        %1263 = vmatpush1.xpose.msra.mxu0 0.0
        %1264 = vmatprep.subr.mxu0 0.0
        %1265 = vmatpush1.xpose.msra.mxu0 0.0
        %1266 = vmatprep.subr.mxu0 0.0
        %1267 = vmatpush1.xpose.msra.mxu0 0.0
        %1268 = vmatprep.subr.mxu0 0.0
        %1269 = vmatpush1.xpose.msra.mxu0 0.0
        %1270 = vmatprep.subr.mxu0 0.0
        %1271 = vmatpush1.xpose.msra.mxu0 0.0
        %1272 = vmatprep.subr.mxu0 0.0
        %1273 = vmatpush1.xpose.msra.mxu0 0.0
        %1274 = vmatprep.subr.mxu0 0.0
        %1275 = vmatpush1.xpose.msra.mxu0 0.0
        %1276 = vmatprep.subr.mxu0 0.0
        %1277 = vmatpush1.xpose.msra.mxu0 0.0
        %1278 = vmatprep.subr.mxu0 0.0
        %1279 = vmatpush1.xpose.msra.mxu0 0.0
        %1280 = vmatprep.subr.mxu0 0.0
        %1281 = vmatpush1.xpose.msra.mxu0 0.0
        %1282 = vmatprep.subr.mxu0 0.0
        %1283 = vmatpush1.xpose.msra.mxu0 0.0
        %1284 = vmatprep.subr.mxu0 0.0
        %1285 = vmatpush1.xpose.msra.mxu0 0.0
        %1286 = vmatprep.subr.mxu0 0.0
        %1287 = vmatpush1.xpose.msra.mxu0 0.0
        %1288 = vmatprep.subr.mxu0 0.0
        %1289 = vmatpush1.xpose.msra.mxu0 0.0
        %1290 = vmatprep.subr.mxu0 0.0
        %1291 = vmatpush1.xpose.msra.mxu0 0.0
        %1292 = vmatprep.subr.mxu0 0.0
        %1293 = vmatpush1.xpose.msra.mxu0 0.0
        %1294 = vmatprep.subr.mxu0 0.0
        %1295 = vmatpush1.xpose.msra.mxu0 0.0
        %1296 = vmatprep.subr.mxu0 0.0
        %1297 = vmatpush1.xpose.msra.mxu0 0.0
        %1298 = vmatprep.subr.mxu0 0.0
        %1299 = vmatpush1.xpose.msra.mxu0 0.0
        %1300 = vmatprep.mubr.f32.mxu0 0.0
        %1301 = vmatmul.mubr.f32.gmra.mrb[0].mxu0 %v793
        %v1302 = vpop.f32.mrb[0].mxu0
        %v1303 = vadd.f32 0.0, %v1302
        %v1304 = vpop.f32.mrb[0].mxu0
        %1305 = vdwg.mxu0
        %v1307 = vsel %vm463, %v790, 0
        %1309 = vmatprep.subr.mxu0 0.0
        %1310 = vmatpush1.xpose.msra.mxu0 %v1307
        %1311 = vmatprep.subr.mxu0 0.0
        %1312 = vmatpush1.xpose.msra.mxu0 0.0
        %1313 = vmatprep.subr.mxu0 0.0
        %1314 = vmatpush1.xpose.msra.mxu0 0.0
        %1315 = vmatprep.subr.mxu0 0.0
        %1316 = vmatpush1.xpose.msra.mxu0 0.0
        %1317 = vmatprep.subr.mxu0 0.0
        %1318 = vmatpush1.xpose.msra.mxu0 0.0
        %1319 = vmatprep.subr.mxu0 0.0
        %1320 = vmatpush1.xpose.msra.mxu0 0.0
        %1321 = vmatprep.subr.mxu0 0.0
        %1322 = vmatpush1.xpose.msra.mxu0 0.0
        %1323 = vmatprep.subr.mxu0 0.0
        %1324 = vmatpush1.xpose.msra.mxu0 0.0
        %1325 = vmatprep.subr.mxu0 0.0
        %1326 = vmatpush1.xpose.msra.mxu0 0.0
        %1327 = vmatprep.subr.mxu0 0.0
        %1328 = vmatpush1.xpose.msra.mxu0 0.0
        %1329 = vmatprep.subr.mxu0 0.0
        %1330 = vmatpush1.xpose.msra.mxu0 0.0
        %1331 = vmatprep.subr.mxu0 0.0
        %1332 = vmatpush1.xpose.msra.mxu0 0.0
        %1333 = vmatprep.subr.mxu0 0.0
        %1334 = vmatpush1.xpose.msra.mxu0 0.0
        %1335 = vmatprep.subr.mxu0 0.0
        %1336 = vmatpush1.xpose.msra.mxu0 0.0
        %1337 = vmatprep.subr.mxu0 0.0
        %1338 = vmatpush1.xpose.msra.mxu0 0.0
        %1339 = vmatprep.subr.mxu0 0.0
        %1340 = vmatpush1.xpose.msra.mxu0 0.0
        %1341 = vmatprep.subr.mxu0 0.0
        %1342 = vmatpush1.xpose.msra.mxu0 0.0
        %1343 = vmatprep.subr.mxu0 0.0
        %1344 = vmatpush1.xpose.msra.mxu0 0.0
        %1345 = vmatprep.subr.mxu0 0.0
        %1346 = vmatpush1.xpose.msra.mxu0 0.0
        %1347 = vmatprep.subr.mxu0 0.0
        %1348 = vmatpush1.xpose.msra.mxu0 0.0
        %1349 = vmatprep.subr.mxu0 0.0
        %1350 = vmatpush1.xpose.msra.mxu0 0.0
        %1351 = vmatprep.subr.mxu0 0.0
        %1352 = vmatpush1.xpose.msra.mxu0 0.0
        %1353 = vmatprep.subr.mxu0 0.0
        %1354 = vmatpush1.xpose.msra.mxu0 0.0
        %1355 = vmatprep.subr.mxu0 0.0
        %1356 = vmatpush1.xpose.msra.mxu0 0.0
        %1357 = vmatprep.subr.mxu0 0.0
        %1358 = vmatpush1.xpose.msra.mxu0 0.0
        %1359 = vmatprep.subr.mxu0 0.0
        %1360 = vmatpush1.xpose.msra.mxu0 0.0
        %1361 = vmatprep.subr.mxu0 0.0
        %1362 = vmatpush1.xpose.msra.mxu0 0.0
        %1363 = vmatprep.subr.mxu0 0.0
        %1364 = vmatpush1.xpose.msra.mxu0 0.0
        %1365 = vmatprep.subr.mxu0 0.0
        %1366 = vmatpush1.xpose.msra.mxu0 0.0
        %1367 = vmatprep.subr.mxu0 0.0
        %1368 = vmatpush1.xpose.msra.mxu0 0.0
        %1369 = vmatprep.subr.mxu0 0.0
        %1370 = vmatpush1.xpose.msra.mxu0 0.0
        %1371 = vmatprep.subr.mxu0 0.0
        %1372 = vmatpush1.xpose.msra.mxu0 0.0
        %1373 = vmatprep.mubr.f32.mxu0 0.0
        %1374 = vmatmul.mubr.f32.gmra.mrb[0].mxu0 %v793
        %v1375 = vpop.f32.mrb[0].mxu0
        %v1376 = vadd.f32 0.0, %v1375
        %v1377 = vpop.f32.mrb[0].mxu0
        %1378 = vdwg.mxu0
        %vm1379 = vcmask 57344
        %v1380 = vsel %vm1379, %v865, -inf
        %1381 = vmax.xlane.f32.xlu0 %v1380
        %v1382 = vpop.xlane.xlu0 %1381
        %v1383 = vsel %vm1379, %v938, -inf
        %1384 = vmax.xlane.f32.xlu0 %v1383
        %v1385 = vpop.xlane.xlu0 %1384
        %v1386 = vsel %vm1379, %v1011, -inf
        %1387 = vmax.xlane.f32.xlu0 %v1386
        %v1388 = vpop.xlane.xlu0 %1387
        %v1389 = vsel %vm1379, %v1084, -inf
        %1390 = vmax.xlane.f32.xlu0 %v1389
        %v1391 = vpop.xlane.xlu0 %1390
        %v1392 = vsel %vm1379, %v1157, -inf
        %1393 = vmax.xlane.f32.xlu0 %v1392
        %v1394 = vpop.xlane.xlu0 %1393
        %v1395 = vsel %vm1379, %v1230, -inf
        %1396 = vmax.xlane.f32.xlu0 %v1395
        %v1397 = vpop.xlane.xlu0 %1396
        %v1398 = vsel %vm1379, %v1303, -inf
        %1399 = vmax.xlane.f32.xlu0 %v1398
        %v1400 = vpop.xlane.xlu0 %1399
        %v1401 = vsel %vm1379, %v1376, -inf
        %1402 = vmax.xlane.f32.xlu0 %v1401
        %v1403 = vpop.xlane.xlu0 %1402
        %v1404 = vsub.f32 %v865, %v1382
        %v1405 = vsub.f32 %v938, %v1385
        %v1406 = vsub.f32 %v1011, %v1388
        %v1407 = vsub.f32 %v1084, %v1391
        %v1408 = vsub.f32 %v1157, %v1394
        %v1409 = vsub.f32 %v1230, %v1397
        %v1410 = vsub.f32 %v1303, %v1400
        %v1411 = vsub.f32 %v1376, %v1403
        %v1412 = vmul.f32 %v1404, 1.442695
        %v1413 = vpow.pop %v1412
        %v1414 = vmul.f32 %v1405, 1.442695
        %v1415 = vpow.pop %v1414
        %v1416 = vmul.f32 %v1406, 1.442695
        %v1417 = vpow.pop %v1416
        %v1418 = vmul.f32 %v1407, 1.442695
        %v1419 = vpow.pop %v1418
        %v1420 = vmul.f32 %v1408, 1.442695
        %v1421 = vpow.pop %v1420
        %v1422 = vmul.f32 %v1409, 1.442695
        %v1423 = vpow.pop %v1422
        %v1424 = vmul.f32 %v1410, 1.442695
        %v1425 = vpow.pop %v1424
        %v1426 = vmul.f32 %v1411, 1.442695
        %v1427 = vpow.pop %v1426
        %v1428 = vsel %vm1379, %v1413, 0.0
        %1429 = vadd.xlane.f32.xlu0 %v1428
        %v1430 = vpop.xlane.xlu0 %1429
        %v1431 = vsel %vm1379, %v1415, 0.0
        %1432 = vadd.xlane.f32.xlu0 %v1431
        %v1433 = vpop.xlane.xlu0 %1432
        %v1434 = vsel %vm1379, %v1417, 0.0
        %1435 = vadd.xlane.f32.xlu0 %v1434
        %v1436 = vpop.xlane.xlu0 %1435
        %v1437 = vsel %vm1379, %v1419, 0.0
        %1438 = vadd.xlane.f32.xlu0 %v1437
        %v1439 = vpop.xlane.xlu0 %1438
        %v1440 = vsel %vm1379, %v1421, 0.0
        %1441 = vadd.xlane.f32.xlu0 %v1440
        %v1442 = vpop.xlane.xlu0 %1441
        %v1443 = vsel %vm1379, %v1423, 0.0
        %1444 = vadd.xlane.f32.xlu0 %v1443
        %v1445 = vpop.xlane.xlu0 %1444
        %v1446 = vsel %vm1379, %v1425, 0.0
        %1447 = vadd.xlane.f32.xlu0 %v1446
        %v1448 = vpop.xlane.xlu0 %1447
        %v1449 = vsel %vm1379, %v1427, 0.0
        %1450 = vadd.xlane.f32.xlu0 %v1449
        %v1451 = vpop.xlane.xlu0 %1450
        %v1452 = vrcp.pop %v1430
        %v1453 = vrcp.pop %v1433
        %v1454 = vrcp.pop %v1436
        %v1455 = vrcp.pop %v1439
        %v1456 = vrcp.pop %v1442
        %v1457 = vrcp.pop %v1445
        %v1458 = vrcp.pop %v1448
        %v1459 = vrcp.pop %v1451
        %v1460 = vmul.f32 %v1413, %v1452
        %v1461 = vmul.f32 %v1415, %v1453
        %v1462 = vmul.f32 %v1417, %v1454
        %v1463 = vmul.f32 %v1419, %v1455
        %v1464 = vmul.f32 %v1421, %v1456
        %v1465 = vmul.f32 %v1423, %v1457
        %v1466 = vmul.f32 %v1425, %v1458
        %v1467 = vmul.f32 %v1427, %v1459
        %vm1468 = vcmask 64512
        %v1470 = vsel %vm1468, %v1460, 0
        %1472 = vmatprep.subr.mxu0 0.0
        %1473 = vmatpush1.msra.mxu0 %v451
        %1474 = vmatprep.subr.mxu0 0.0
        %1475 = vmatpush1.msra.mxu0 0.0
        %1476 = vmatprep.subr.mxu0 0.0
        %1477 = vmatpush1.msra.mxu0 0.0
        %1478 = vmatprep.subr.mxu0 0.0
        %1479 = vmatpush1.msra.mxu0 0.0
        %1480 = vmatprep.subr.mxu0 0.0
        %1481 = vmatpush1.msra.mxu0 0.0
        %1482 = vmatprep.subr.mxu0 0.0
        %1483 = vmatpush1.msra.mxu0 0.0
        %1484 = vmatprep.subr.mxu0 0.0
        %1485 = vmatpush1.msra.mxu0 0.0
        %1486 = vmatprep.subr.mxu0 0.0
        %1487 = vmatpush1.msra.mxu0 0.0
        %1488 = vmatprep.subr.mxu0 0.0
        %1489 = vmatpush1.msra.mxu0 0.0
        %1490 = vmatprep.subr.mxu0 0.0
        %1491 = vmatpush1.msra.mxu0 0.0
        %1492 = vmatprep.subr.mxu0 0.0
        %1493 = vmatpush1.msra.mxu0 0.0
        %1494 = vmatprep.subr.mxu0 0.0
        %1495 = vmatpush1.msra.mxu0 0.0
        %1496 = vmatprep.subr.mxu0 0.0
        %1497 = vmatpush1.msra.mxu0 0.0
        %1498 = vmatprep.subr.mxu0 0.0
        %1499 = vmatpush1.msra.mxu0 0.0
        %1500 = vmatprep.subr.mxu0 0.0
        %1501 = vmatpush1.msra.mxu0 0.0
        %1502 = vmatprep.subr.mxu0 0.0
        %1503 = vmatpush1.msra.mxu0 0.0
        %1504 = vmatprep.subr.mxu0 0.0
        %1505 = vmatpush1.msra.mxu0 0.0
        %1506 = vmatprep.subr.mxu0 0.0
        %1507 = vmatpush1.msra.mxu0 0.0
        %1508 = vmatprep.subr.mxu0 0.0
        %1509 = vmatpush1.msra.mxu0 0.0
        %1510 = vmatprep.subr.mxu0 0.0
        %1511 = vmatpush1.msra.mxu0 0.0
        %1512 = vmatprep.subr.mxu0 0.0
        %1513 = vmatpush1.msra.mxu0 0.0
        %1514 = vmatprep.subr.mxu0 0.0
        %1515 = vmatpush1.msra.mxu0 0.0
        %1516 = vmatprep.subr.mxu0 0.0
        %1517 = vmatpush1.msra.mxu0 0.0
        %1518 = vmatprep.subr.mxu0 0.0
        %1519 = vmatpush1.msra.mxu0 0.0
        %1520 = vmatprep.subr.mxu0 0.0
        %1521 = vmatpush1.msra.mxu0 0.0
        %1522 = vmatprep.subr.mxu0 0.0
        %1523 = vmatpush1.msra.mxu0 0.0
        %1524 = vmatprep.subr.mxu0 0.0
        %1525 = vmatpush1.msra.mxu0 0.0
        %1526 = vmatprep.subr.mxu0 0.0
        %1527 = vmatpush1.msra.mxu0 0.0
        %1528 = vmatprep.subr.mxu0 0.0
        %1529 = vmatpush1.msra.mxu0 0.0
        %1530 = vmatprep.subr.mxu0 0.0
        %1531 = vmatpush1.msra.mxu0 0.0
        %1532 = vmatprep.subr.mxu0 0.0
        %1533 = vmatpush1.msra.mxu0 0.0
        %1534 = vmatprep.subr.mxu0 0.0
        %1535 = vmatpush1.msra.mxu0 0.0
        %1536 = vmatprep.mubr.f32.mxu0 0.0
        %1537 = vmatmul.mubr.f32.gmra.mrb[0].mxu0 %v1470
        %v1538 = vpop.f32.mrb[0].mxu0
        %v1539 = vadd.f32 0.0, %v1538
        %v1540 = vpop.f32.mrb[0].mxu0
        %1541 = vdwg.mxu0
        %v1543 = vsel %vm1468, %v1461, 0
        %1545 = vmatprep.subr.mxu0 0.0
        %1546 = vmatpush1.msra.mxu0 %v452
        %1547 = vmatprep.subr.mxu0 0.0
        %1548 = vmatpush1.msra.mxu0 0.0
        %1549 = vmatprep.subr.mxu0 0.0
        %1550 = vmatpush1.msra.mxu0 0.0
        %1551 = vmatprep.subr.mxu0 0.0
        %1552 = vmatpush1.msra.mxu0 0.0
        %1553 = vmatprep.subr.mxu0 0.0
        %1554 = vmatpush1.msra.mxu0 0.0
        %1555 = vmatprep.subr.mxu0 0.0
        %1556 = vmatpush1.msra.mxu0 0.0
        %1557 = vmatprep.subr.mxu0 0.0
        %1558 = vmatpush1.msra.mxu0 0.0
        %1559 = vmatprep.subr.mxu0 0.0
        %1560 = vmatpush1.msra.mxu0 0.0
        %1561 = vmatprep.subr.mxu0 0.0
        %1562 = vmatpush1.msra.mxu0 0.0
        %1563 = vmatprep.subr.mxu0 0.0
        %1564 = vmatpush1.msra.mxu0 0.0
        %1565 = vmatprep.subr.mxu0 0.0
        %1566 = vmatpush1.msra.mxu0 0.0
        %1567 = vmatprep.subr.mxu0 0.0
        %1568 = vmatpush1.msra.mxu0 0.0
        %1569 = vmatprep.subr.mxu0 0.0
        %1570 = vmatpush1.msra.mxu0 0.0
        %1571 = vmatprep.subr.mxu0 0.0
        %1572 = vmatpush1.msra.mxu0 0.0
        %1573 = vmatprep.subr.mxu0 0.0
        %1574 = vmatpush1.msra.mxu0 0.0
        %1575 = vmatprep.subr.mxu0 0.0
        %1576 = vmatpush1.msra.mxu0 0.0
        %1577 = vmatprep.subr.mxu0 0.0
        %1578 = vmatpush1.msra.mxu0 0.0
        %1579 = vmatprep.subr.mxu0 0.0
        %1580 = vmatpush1.msra.mxu0 0.0
        %1581 = vmatprep.subr.mxu0 0.0
        %1582 = vmatpush1.msra.mxu0 0.0
        %1583 = vmatprep.subr.mxu0 0.0
        %1584 = vmatpush1.msra.mxu0 0.0
        %1585 = vmatprep.subr.mxu0 0.0
        %1586 = vmatpush1.msra.mxu0 0.0
        %1587 = vmatprep.subr.mxu0 0.0
        %1588 = vmatpush1.msra.mxu0 0.0
        %1589 = vmatprep.subr.mxu0 0.0
        %1590 = vmatpush1.msra.mxu0 0.0
        %1591 = vmatprep.subr.mxu0 0.0
        %1592 = vmatpush1.msra.mxu0 0.0
        %1593 = vmatprep.subr.mxu0 0.0
        %1594 = vmatpush1.msra.mxu0 0.0
        %1595 = vmatprep.subr.mxu0 0.0
        %1596 = vmatpush1.msra.mxu0 0.0
        %1597 = vmatprep.subr.mxu0 0.0
        %1598 = vmatpush1.msra.mxu0 0.0
        %1599 = vmatprep.subr.mxu0 0.0
        %1600 = vmatpush1.msra.mxu0 0.0
        %1601 = vmatprep.subr.mxu0 0.0
        %1602 = vmatpush1.msra.mxu0 0.0
        %1603 = vmatprep.subr.mxu0 0.0
        %1604 = vmatpush1.msra.mxu0 0.0
        %1605 = vmatprep.subr.mxu0 0.0
        %1606 = vmatpush1.msra.mxu0 0.0
        %1607 = vmatprep.subr.mxu0 0.0
        %1608 = vmatpush1.msra.mxu0 0.0
        %1609 = vmatprep.mubr.f32.mxu0 0.0
        %1610 = vmatmul.mubr.f32.gmra.mrb[0].mxu0 %v1543
        %v1611 = vpop.f32.mrb[0].mxu0
        %v1612 = vadd.f32 0.0, %v1611
        %v1613 = vpop.f32.mrb[0].mxu0
        %1614 = vdwg.mxu0
        %v1616 = vsel %vm1468, %v1462, 0
        %1618 = vmatprep.subr.mxu0 0.0
        %1619 = vmatpush1.msra.mxu0 %v453
        %1620 = vmatprep.subr.mxu0 0.0
        %1621 = vmatpush1.msra.mxu0 0.0
        %1622 = vmatprep.subr.mxu0 0.0
        %1623 = vmatpush1.msra.mxu0 0.0
        %1624 = vmatprep.subr.mxu0 0.0
        %1625 = vmatpush1.msra.mxu0 0.0
        %1626 = vmatprep.subr.mxu0 0.0
        %1627 = vmatpush1.msra.mxu0 0.0
        %1628 = vmatprep.subr.mxu0 0.0
        %1629 = vmatpush1.msra.mxu0 0.0
        %1630 = vmatprep.subr.mxu0 0.0
        %1631 = vmatpush1.msra.mxu0 0.0
        %1632 = vmatprep.subr.mxu0 0.0
        %1633 = vmatpush1.msra.mxu0 0.0
        %1634 = vmatprep.subr.mxu0 0.0
        %1635 = vmatpush1.msra.mxu0 0.0
        %1636 = vmatprep.subr.mxu0 0.0
        %1637 = vmatpush1.msra.mxu0 0.0
        %1638 = vmatprep.subr.mxu0 0.0
        %1639 = vmatpush1.msra.mxu0 0.0
        %1640 = vmatprep.subr.mxu0 0.0
        %1641 = vmatpush1.msra.mxu0 0.0
        %1642 = vmatprep.subr.mxu0 0.0
        %1643 = vmatpush1.msra.mxu0 0.0
        %1644 = vmatprep.subr.mxu0 0.0
        %1645 = vmatpush1.msra.mxu0 0.0
        %1646 = vmatprep.subr.mxu0 0.0
        %1647 = vmatpush1.msra.mxu0 0.0
        %1648 = vmatprep.subr.mxu0 0.0
        %1649 = vmatpush1.msra.mxu0 0.0
        %1650 = vmatprep.subr.mxu0 0.0
        %1651 = vmatpush1.msra.mxu0 0.0
        %1652 = vmatprep.subr.mxu0 0.0
        %1653 = vmatpush1.msra.mxu0 0.0
        %1654 = vmatprep.subr.mxu0 0.0
        %1655 = vmatpush1.msra.mxu0 0.0
        %1656 = vmatprep.subr.mxu0 0.0
        %1657 = vmatpush1.msra.mxu0 0.0
        %1658 = vmatprep.subr.mxu0 0.0
        %1659 = vmatpush1.msra.mxu0 0.0
        %1660 = vmatprep.subr.mxu0 0.0
        %1661 = vmatpush1.msra.mxu0 0.0
        %1662 = vmatprep.subr.mxu0 0.0
        %1663 = vmatpush1.msra.mxu0 0.0
        %1664 = vmatprep.subr.mxu0 0.0
        %1665 = vmatpush1.msra.mxu0 0.0
        %1666 = vmatprep.subr.mxu0 0.0
        %1667 = vmatpush1.msra.mxu0 0.0
        %1668 = vmatprep.subr.mxu0 0.0
        %1669 = vmatpush1.msra.mxu0 0.0
        %1670 = vmatprep.subr.mxu0 0.0
        %1671 = vmatpush1.msra.mxu0 0.0
        %1672 = vmatprep.subr.mxu0 0.0
        %1673 = vmatpush1.msra.mxu0 0.0
        %1674 = vmatprep.subr.mxu0 0.0
        %1675 = vmatpush1.msra.mxu0 0.0
        %1676 = vmatprep.subr.mxu0 0.0
        %1677 = vmatpush1.msra.mxu0 0.0
        %1678 = vmatprep.subr.mxu0 0.0
        %1679 = vmatpush1.msra.mxu0 0.0
        %1680 = vmatprep.subr.mxu0 0.0
        %1681 = vmatpush1.msra.mxu0 0.0
        %1682 = vmatprep.mubr.f32.mxu0 0.0
        %1683 = vmatmul.mubr.f32.gmra.mrb[0].mxu0 %v1616
        %v1684 = vpop.f32.mrb[0].mxu0
        %v1685 = vadd.f32 0.0, %v1684
        %v1686 = vpop.f32.mrb[0].mxu0
        %1687 = vdwg.mxu0
        %v1689 = vsel %vm1468, %v1463, 0
        %1691 = vmatprep.subr.mxu0 0.0
        %1692 = vmatpush1.msra.mxu0 %v454
        %1693 = vmatprep.subr.mxu0 0.0
        %1694 = vmatpush1.msra.mxu0 0.0
        %1695 = vmatprep.subr.mxu0 0.0
        %1696 = vmatpush1.msra.mxu0 0.0
        %1697 = vmatprep.subr.mxu0 0.0
        %1698 = vmatpush1.msra.mxu0 0.0
        %1699 = vmatprep.subr.mxu0 0.0
        %1700 = vmatpush1.msra.mxu0 0.0
        %1701 = vmatprep.subr.mxu0 0.0
        %1702 = vmatpush1.msra.mxu0 0.0
        %1703 = vmatprep.subr.mxu0 0.0
        %1704 = vmatpush1.msra.mxu0 0.0
        %1705 = vmatprep.subr.mxu0 0.0
        %1706 = vmatpush1.msra.mxu0 0.0
        %1707 = vmatprep.subr.mxu0 0.0
        %1708 = vmatpush1.msra.mxu0 0.0
        %1709 = vmatprep.subr.mxu0 0.0
        %1710 = vmatpush1.msra.mxu0 0.0
        %1711 = vmatprep.subr.mxu0 0.0
        %1712 = vmatpush1.msra.mxu0 0.0
        %1713 = vmatprep.subr.mxu0 0.0
        %1714 = vmatpush1.msra.mxu0 0.0
        %1715 = vmatprep.subr.mxu0 0.0
        %1716 = vmatpush1.msra.mxu0 0.0
        %1717 = vmatprep.subr.mxu0 0.0
        %1718 = vmatpush1.msra.mxu0 0.0
        %1719 = vmatprep.subr.mxu0 0.0
        %1720 = vmatpush1.msra.mxu0 0.0
        %1721 = vmatprep.subr.mxu0 0.0
        %1722 = vmatpush1.msra.mxu0 0.0
        %1723 = vmatprep.subr.mxu0 0.0
        %1724 = vmatpush1.msra.mxu0 0.0
        %1725 = vmatprep.subr.mxu0 0.0
        %1726 = vmatpush1.msra.mxu0 0.0
        %1727 = vmatprep.subr.mxu0 0.0
        %1728 = vmatpush1.msra.mxu0 0.0
        %1729 = vmatprep.subr.mxu0 0.0
        %1730 = vmatpush1.msra.mxu0 0.0
        %1731 = vmatprep.subr.mxu0 0.0
        %1732 = vmatpush1.msra.mxu0 0.0
        %1733 = vmatprep.subr.mxu0 0.0
        %1734 = vmatpush1.msra.mxu0 0.0
        %1735 = vmatprep.subr.mxu0 0.0
        %1736 = vmatpush1.msra.mxu0 0.0
        %1737 = vmatprep.subr.mxu0 0.0
        %1738 = vmatpush1.msra.mxu0 0.0
        %1739 = vmatprep.subr.mxu0 0.0
        %1740 = vmatpush1.msra.mxu0 0.0
        %1741 = vmatprep.subr.mxu0 0.0
        %1742 = vmatpush1.msra.mxu0 0.0
        %1743 = vmatprep.subr.mxu0 0.0
        %1744 = vmatpush1.msra.mxu0 0.0
        %1745 = vmatprep.subr.mxu0 0.0
        %1746 = vmatpush1.msra.mxu0 0.0
        %1747 = vmatprep.subr.mxu0 0.0
        %1748 = vmatpush1.msra.mxu0 0.0
        %1749 = vmatprep.subr.mxu0 0.0
        %1750 = vmatpush1.msra.mxu0 0.0
        %1751 = vmatprep.subr.mxu0 0.0
        %1752 = vmatpush1.msra.mxu0 0.0
        %1753 = vmatprep.subr.mxu0 0.0
        %1754 = vmatpush1.msra.mxu0 0.0
        %1755 = vmatprep.mubr.f32.mxu0 0.0
        %1756 = vmatmul.mubr.f32.gmra.mrb[0].mxu0 %v1689
        %v1757 = vpop.f32.mrb[0].mxu0
        %v1758 = vadd.f32 0.0, %v1757
        %v1759 = vpop.f32.mrb[0].mxu0
        %1760 = vdwg.mxu0
        %v1762 = vsel %vm1468, %v1464, 0
        %1764 = vmatprep.subr.mxu0 0.0
        %1765 = vmatpush1.msra.mxu0 %v455
        %1766 = vmatprep.subr.mxu0 0.0
        %1767 = vmatpush1.msra.mxu0 0.0
        %1768 = vmatprep.subr.mxu0 0.0
        %1769 = vmatpush1.msra.mxu0 0.0
        %1770 = vmatprep.subr.mxu0 0.0
        %1771 = vmatpush1.msra.mxu0 0.0
        %1772 = vmatprep.subr.mxu0 0.0
        %1773 = vmatpush1.msra.mxu0 0.0
        %1774 = vmatprep.subr.mxu0 0.0
        %1775 = vmatpush1.msra.mxu0 0.0
        %1776 = vmatprep.subr.mxu0 0.0
        %1777 = vmatpush1.msra.mxu0 0.0
        %1778 = vmatprep.subr.mxu0 0.0
        %1779 = vmatpush1.msra.mxu0 0.0
        %1780 = vmatprep.subr.mxu0 0.0
        %1781 = vmatpush1.msra.mxu0 0.0
        %1782 = vmatprep.subr.mxu0 0.0
        %1783 = vmatpush1.msra.mxu0 0.0
        %1784 = vmatprep.subr.mxu0 0.0
        %1785 = vmatpush1.msra.mxu0 0.0
        %1786 = vmatprep.subr.mxu0 0.0
        %1787 = vmatpush1.msra.mxu0 0.0
        %1788 = vmatprep.subr.mxu0 0.0
        %1789 = vmatpush1.msra.mxu0 0.0
        %1790 = vmatprep.subr.mxu0 0.0
        %1791 = vmatpush1.msra.mxu0 0.0
        %1792 = vmatprep.subr.mxu0 0.0
        %1793 = vmatpush1.msra.mxu0 0.0
        %1794 = vmatprep.subr.mxu0 0.0
        %1795 = vmatpush1.msra.mxu0 0.0
        %1796 = vmatprep.subr.mxu0 0.0
        %1797 = vmatpush1.msra.mxu0 0.0
        %1798 = vmatprep.subr.mxu0 0.0
        %1799 = vmatpush1.msra.mxu0 0.0
        %1800 = vmatprep.subr.mxu0 0.0
        %1801 = vmatpush1.msra.mxu0 0.0
        %1802 = vmatprep.subr.mxu0 0.0
        %1803 = vmatpush1.msra.mxu0 0.0
        %1804 = vmatprep.subr.mxu0 0.0
        %1805 = vmatpush1.msra.mxu0 0.0
        %1806 = vmatprep.subr.mxu0 0.0
        %1807 = vmatpush1.msra.mxu0 0.0
        %1808 = vmatprep.subr.mxu0 0.0
        %1809 = vmatpush1.msra.mxu0 0.0
        %1810 = vmatprep.subr.mxu0 0.0
        %1811 = vmatpush1.msra.mxu0 0.0
        %1812 = vmatprep.subr.mxu0 0.0
        %1813 = vmatpush1.msra.mxu0 0.0
        %1814 = vmatprep.subr.mxu0 0.0
        %1815 = vmatpush1.msra.mxu0 0.0
        %1816 = vmatprep.subr.mxu0 0.0
        %1817 = vmatpush1.msra.mxu0 0.0
        %1818 = vmatprep.subr.mxu0 0.0
        %1819 = vmatpush1.msra.mxu0 0.0
        %1820 = vmatprep.subr.mxu0 0.0
        %1821 = vmatpush1.msra.mxu0 0.0
        %1822 = vmatprep.subr.mxu0 0.0
        %1823 = vmatpush1.msra.mxu0 0.0
        %1824 = vmatprep.subr.mxu0 0.0
        %1825 = vmatpush1.msra.mxu0 0.0
        %1826 = vmatprep.subr.mxu0 0.0
        %1827 = vmatpush1.msra.mxu0 0.0
        %1828 = vmatprep.mubr.f32.mxu0 0.0
        %1829 = vmatmul.mubr.f32.gmra.mrb[0].mxu0 %v1762
        %v1830 = vpop.f32.mrb[0].mxu0
        %v1831 = vadd.f32 0.0, %v1830
        %v1832 = vpop.f32.mrb[0].mxu0
        %1833 = vdwg.mxu0
        %v1835 = vsel %vm1468, %v1465, 0
        %1837 = vmatprep.subr.mxu0 0.0
        %1838 = vmatpush1.msra.mxu0 %v456
        %1839 = vmatprep.subr.mxu0 0.0
        %1840 = vmatpush1.msra.mxu0 0.0
        %1841 = vmatprep.subr.mxu0 0.0
        %1842 = vmatpush1.msra.mxu0 0.0
        %1843 = vmatprep.subr.mxu0 0.0
        %1844 = vmatpush1.msra.mxu0 0.0
        %1845 = vmatprep.subr.mxu0 0.0
        %1846 = vmatpush1.msra.mxu0 0.0
        %1847 = vmatprep.subr.mxu0 0.0
        %1848 = vmatpush1.msra.mxu0 0.0
        %1849 = vmatprep.subr.mxu0 0.0
        %1850 = vmatpush1.msra.mxu0 0.0
        %1851 = vmatprep.subr.mxu0 0.0
        %1852 = vmatpush1.msra.mxu0 0.0
        %1853 = vmatprep.subr.mxu0 0.0
        %1854 = vmatpush1.msra.mxu0 0.0
        %1855 = vmatprep.subr.mxu0 0.0
        %1856 = vmatpush1.msra.mxu0 0.0
        %1857 = vmatprep.subr.mxu0 0.0
        %1858 = vmatpush1.msra.mxu0 0.0
        %1859 = vmatprep.subr.mxu0 0.0
        %1860 = vmatpush1.msra.mxu0 0.0
        %1861 = vmatprep.subr.mxu0 0.0
        %1862 = vmatpush1.msra.mxu0 0.0
        %1863 = vmatprep.subr.mxu0 0.0
        %1864 = vmatpush1.msra.mxu0 0.0
        %1865 = vmatprep.subr.mxu0 0.0
        %1866 = vmatpush1.msra.mxu0 0.0
        %1867 = vmatprep.subr.mxu0 0.0
        %1868 = vmatpush1.msra.mxu0 0.0
        %1869 = vmatprep.subr.mxu0 0.0
        %1870 = vmatpush1.msra.mxu0 0.0
        %1871 = vmatprep.subr.mxu0 0.0
        %1872 = vmatpush1.msra.mxu0 0.0
        %1873 = vmatprep.subr.mxu0 0.0
        %1874 = vmatpush1.msra.mxu0 0.0
        %1875 = vmatprep.subr.mxu0 0.0
        %1876 = vmatpush1.msra.mxu0 0.0
        %1877 = vmatprep.subr.mxu0 0.0
        %1878 = vmatpush1.msra.mxu0 0.0
        %1879 = vmatprep.subr.mxu0 0.0
        %1880 = vmatpush1.msra.mxu0 0.0
        %1881 = vmatprep.subr.mxu0 0.0
        %1882 = vmatpush1.msra.mxu0 0.0
        %1883 = vmatprep.subr.mxu0 0.0
        %1884 = vmatpush1.msra.mxu0 0.0
        %1885 = vmatprep.subr.mxu0 0.0
        %1886 = vmatpush1.msra.mxu0 0.0
        %1887 = vmatprep.subr.mxu0 0.0
        %1888 = vmatpush1.msra.mxu0 0.0
        %1889 = vmatprep.subr.mxu0 0.0
        %1890 = vmatpush1.msra.mxu0 0.0
        %1891 = vmatprep.subr.mxu0 0.0
        %1892 = vmatpush1.msra.mxu0 0.0
        %1893 = vmatprep.subr.mxu0 0.0
        %1894 = vmatpush1.msra.mxu0 0.0
        %1895 = vmatprep.subr.mxu0 0.0
        %1896 = vmatpush1.msra.mxu0 0.0
        %1897 = vmatprep.subr.mxu0 0.0
        %1898 = vmatpush1.msra.mxu0 0.0
        %1899 = vmatprep.subr.mxu0 0.0
        %1900 = vmatpush1.msra.mxu0 0.0
        %1901 = vmatprep.mubr.f32.mxu0 0.0
        %1902 = vmatmul.mubr.f32.gmra.mrb[0].mxu0 %v1835
        %v1903 = vpop.f32.mrb[0].mxu0
        %v1904 = vadd.f32 0.0, %v1903
        %v1905 = vpop.f32.mrb[0].mxu0
        %1906 = vdwg.mxu0
        %v1908 = vsel %vm1468, %v1466, 0
        %1910 = vmatprep.subr.mxu0 0.0
        %1911 = vmatpush1.msra.mxu0 %v457
        %1912 = vmatprep.subr.mxu0 0.0
        %1913 = vmatpush1.msra.mxu0 0.0
        %1914 = vmatprep.subr.mxu0 0.0
        %1915 = vmatpush1.msra.mxu0 0.0
        %1916 = vmatprep.subr.mxu0 0.0
        %1917 = vmatpush1.msra.mxu0 0.0
        %1918 = vmatprep.subr.mxu0 0.0
        %1919 = vmatpush1.msra.mxu0 0.0
        %1920 = vmatprep.subr.mxu0 0.0
        %1921 = vmatpush1.msra.mxu0 0.0
        %1922 = vmatprep.subr.mxu0 0.0
        %1923 = vmatpush1.msra.mxu0 0.0
        %1924 = vmatprep.subr.mxu0 0.0
        %1925 = vmatpush1.msra.mxu0 0.0
        %1926 = vmatprep.subr.mxu0 0.0
        %1927 = vmatpush1.msra.mxu0 0.0
        %1928 = vmatprep.subr.mxu0 0.0
        %1929 = vmatpush1.msra.mxu0 0.0
        %1930 = vmatprep.subr.mxu0 0.0
        %1931 = vmatpush1.msra.mxu0 0.0
        %1932 = vmatprep.subr.mxu0 0.0
        %1933 = vmatpush1.msra.mxu0 0.0
        %1934 = vmatprep.subr.mxu0 0.0
        %1935 = vmatpush1.msra.mxu0 0.0
        %1936 = vmatprep.subr.mxu0 0.0
        %1937 = vmatpush1.msra.mxu0 0.0
        %1938 = vmatprep.subr.mxu0 0.0
        %1939 = vmatpush1.msra.mxu0 0.0
        %1940 = vmatprep.subr.mxu0 0.0
        %1941 = vmatpush1.msra.mxu0 0.0
        %1942 = vmatprep.subr.mxu0 0.0
        %1943 = vmatpush1.msra.mxu0 0.0
        %1944 = vmatprep.subr.mxu0 0.0
        %1945 = vmatpush1.msra.mxu0 0.0
        %1946 = vmatprep.subr.mxu0 0.0
        %1947 = vmatpush1.msra.mxu0 0.0
        %1948 = vmatprep.subr.mxu0 0.0
        %1949 = vmatpush1.msra.mxu0 0.0
        %1950 = vmatprep.subr.mxu0 0.0
        %1951 = vmatpush1.msra.mxu0 0.0
        %1952 = vmatprep.subr.mxu0 0.0
        %1953 = vmatpush1.msra.mxu0 0.0
        %1954 = vmatprep.subr.mxu0 0.0
        %1955 = vmatpush1.msra.mxu0 0.0
        %1956 = vmatprep.subr.mxu0 0.0
        %1957 = vmatpush1.msra.mxu0 0.0
        %1958 = vmatprep.subr.mxu0 0.0
        %1959 = vmatpush1.msra.mxu0 0.0
        %1960 = vmatprep.subr.mxu0 0.0
        %1961 = vmatpush1.msra.mxu0 0.0
        %1962 = vmatprep.subr.mxu0 0.0
        %1963 = vmatpush1.msra.mxu0 0.0
        %1964 = vmatprep.subr.mxu0 0.0
        %1965 = vmatpush1.msra.mxu0 0.0
        %1966 = vmatprep.subr.mxu0 0.0
        %1967 = vmatpush1.msra.mxu0 0.0
        %1968 = vmatprep.subr.mxu0 0.0
        %1969 = vmatpush1.msra.mxu0 0.0
        %1970 = vmatprep.subr.mxu0 0.0
        %1971 = vmatpush1.msra.mxu0 0.0
        %1972 = vmatprep.subr.mxu0 0.0
        %1973 = vmatpush1.msra.mxu0 0.0
        %1974 = vmatprep.mubr.f32.mxu0 0.0
        %1975 = vmatmul.mubr.f32.gmra.mrb[0].mxu0 %v1908
        %v1976 = vpop.f32.mrb[0].mxu0
        %v1977 = vadd.f32 0.0, %v1976
        %v1978 = vpop.f32.mrb[0].mxu0
        %1979 = vdwg.mxu0
        %v1981 = vsel %vm1468, %v1467, 0
        %1983 = vmatprep.subr.mxu0 0.0
        %1984 = vmatpush1.msra.mxu0 %v458
        %1985 = vmatprep.subr.mxu0 0.0
        %1986 = vmatpush1.msra.mxu0 0.0
        %1987 = vmatprep.subr.mxu0 0.0
        %1988 = vmatpush1.msra.mxu0 0.0
        %1989 = vmatprep.subr.mxu0 0.0
        %1990 = vmatpush1.msra.mxu0 0.0
        %1991 = vmatprep.subr.mxu0 0.0
        %1992 = vmatpush1.msra.mxu0 0.0
        %1993 = vmatprep.subr.mxu0 0.0
        %1994 = vmatpush1.msra.mxu0 0.0
        %1995 = vmatprep.subr.mxu0 0.0
        %1996 = vmatpush1.msra.mxu0 0.0
        %1997 = vmatprep.subr.mxu0 0.0
        %1998 = vmatpush1.msra.mxu0 0.0
        %1999 = vmatprep.subr.mxu0 0.0
        %2000 = vmatpush1.msra.mxu0 0.0
        %2001 = vmatprep.subr.mxu0 0.0
        %2002 = vmatpush1.msra.mxu0 0.0
        %2003 = vmatprep.subr.mxu0 0.0
        %2004 = vmatpush1.msra.mxu0 0.0
        %2005 = vmatprep.subr.mxu0 0.0
        %2006 = vmatpush1.msra.mxu0 0.0
        %2007 = vmatprep.subr.mxu0 0.0
        %2008 = vmatpush1.msra.mxu0 0.0
        %2009 = vmatprep.subr.mxu0 0.0
        %2010 = vmatpush1.msra.mxu0 0.0
        %2011 = vmatprep.subr.mxu0 0.0
        %2012 = vmatpush1.msra.mxu0 0.0
        %2013 = vmatprep.subr.mxu0 0.0
        %2014 = vmatpush1.msra.mxu0 0.0
        %2015 = vmatprep.subr.mxu0 0.0
        %2016 = vmatpush1.msra.mxu0 0.0
        %2017 = vmatprep.subr.mxu0 0.0
        %2018 = vmatpush1.msra.mxu0 0.0
        %2019 = vmatprep.subr.mxu0 0.0
        %2020 = vmatpush1.msra.mxu0 0.0
        %2021 = vmatprep.subr.mxu0 0.0
        %2022 = vmatpush1.msra.mxu0 0.0
        %2023 = vmatprep.subr.mxu0 0.0
        %2024 = vmatpush1.msra.mxu0 0.0
        %2025 = vmatprep.subr.mxu0 0.0
        %2026 = vmatpush1.msra.mxu0 0.0
        %2027 = vmatprep.subr.mxu0 0.0
        %2028 = vmatpush1.msra.mxu0 0.0
        %2029 = vmatprep.subr.mxu0 0.0
        %2030 = vmatpush1.msra.mxu0 0.0
        %2031 = vmatprep.subr.mxu0 0.0
        %2032 = vmatpush1.msra.mxu0 0.0
        %2033 = vmatprep.subr.mxu0 0.0
        %2034 = vmatpush1.msra.mxu0 0.0
        %2035 = vmatprep.subr.mxu0 0.0
        %2036 = vmatpush1.msra.mxu0 0.0
        %2037 = vmatprep.subr.mxu0 0.0
        %2038 = vmatpush1.msra.mxu0 0.0
        %2039 = vmatprep.subr.mxu0 0.0
        %2040 = vmatpush1.msra.mxu0 0.0
        %2041 = vmatprep.subr.mxu0 0.0
        %2042 = vmatpush1.msra.mxu0 0.0
        %2043 = vmatprep.subr.mxu0 0.0
        %2044 = vmatpush1.msra.mxu0 0.0
        %2045 = vmatprep.subr.mxu0 0.0
        %2046 = vmatpush1.msra.mxu0 0.0
        %2047 = vmatprep.mubr.f32.mxu0 0.0
        %2048 = vmatmul.mubr.f32.gmra.mrb[0].mxu0 %v1981
        %v2049 = vpop.f32.mrb[0].mxu0
        %v2050 = vadd.f32 0.0, %v2049
        %v2051 = vpop.f32.mrb[0].mxu0
        %2052 = vdwg.mxu0
        %vm2053 = vcmask 253952
        %2054 = vst.msk [vmem:[%s427] sm:$0x1] %vm2053, %v1539
        %2055 = vst.msk [vmem:[%s427 + $0x1] sm:$0x1] %vm2053, %v1612
        %2056 = vst.msk [vmem:[%s427 + $0x2] sm:$0x1] %vm2053, %v1685
        %2057 = vst.msk [vmem:[%s427 + $0x3] sm:$0x1] %vm2053, %v1758
        %2058 = vst.msk [vmem:[%s427 + $0x4] sm:$0x1] %vm2053, %v1831
        %2059 = vst.msk [vmem:[%s427 + $0x5] sm:$0x1] %vm2053, %v1904
        %2060 = vst.msk [vmem:[%s427 + $0x6] sm:$0x1] %vm2053, %v1977
        %2061 = vst.msk [vmem:[%s427 + $0x7] sm:$0x1] %vm2053, %v2050
        %2062 = vst.msk [vmem:[%s440] sm:$0x1] %vm1379, %v1460
        %2063 = vst.msk [vmem:[%s440 + $0x1] sm:$0x1] %vm1379, %v1461
        %2064 = vst.msk [vmem:[%s440 + $0x2] sm:$0x1] %vm1379, %v1462
        %2065 = vst.msk [vmem:[%s440 + $0x3] sm:$0x1] %vm1379, %v1463
        %2066 = vst.msk [vmem:[%s440 + $0x4] sm:$0x1] %vm1379, %v1464
        %2067 = vst.msk [vmem:[%s440 + $0x5] sm:$0x1] %vm1379, %v1465
        %2068 = vst.msk [vmem:[%s440 + $0x6] sm:$0x1] %vm1379, %v1466
        %2069 = vst.msk [vmem:[%s440 + $0x7] sm:$0x1] %vm1379, %v1467
        %s2070 = sand.u32 %s200, 1
        %s2071 = scalar_lea.sflag [#allocation4], %s2070
        %s2072 = sand.u32 %s200, 1
        %s2073 = smul.addr %s2072, 8
        %s2074 = scalar_lea.vmem [#allocation11], %s2073
        %s2075 = smul.u32 8, %s30
        %p2076 = scmp.lt.s32.totalorder %s2075, 15
        %s2077 = scalar_select %p2076, %s2075, 15
        %s2078 = scalar_lea.vmem %s8, %s2077
        // Predicated region
        $region69: #{tpu_custom_call.1} parent=47 // pred_check
          %p2079 = pneg %p210
        $region70: #{tpu_custom_call.1} parent=47 // pred_check_branch
          %2081 = sbr.rel (%p2079) target = $region72
        $region71: #{tpu_custom_call.1} parent=47 // pred_region
          %s2082 = smul.u32 8, %s30
          %s2084 = ssub.s32 128, 128
          %2085 = vsyncadd %s2071, %s2084
          %s2086 = smul.addr %s2082, 16
          %s2087 = scalar_lea.hbm %s7, %s2086
          %s2088 = sshll.u32 %s2074, 4
          %s2089 = int_to_ptr.vmem [resolvable:$true] %s2088
          %2094 = dma.vmem_to_hbm [thread:$0]  %s2089, 128, %s2087, %s2071, 16, 16, 1
        $region72: #{tpu_custom_call.1} parent=47 // pred_fallthru
          _
        // Predicated region
        $region73: #{tpu_custom_call.1} parent=47 // pred_check
          %p2095 = pneg %p236
        $region74: #{tpu_custom_call.1} parent=47 // pred_check_branch
          %2097 = sbr.rel (%p2095) target = $region76
        $region75: #{tpu_custom_call.1} parent=47 // pred_region
          %s2098 = smul.u32 8, %s30
        $region76: #{tpu_custom_call.1} parent=47 // pred_fallthru
          _
      $region48: #{tpu_custom_call.1} parent=5 // pred_fallthru
        _
      %p2099 = scmp.le.s32.totalorder 2, %s25
      // Predicated region
      $region77: #{tpu_custom_call.1} parent=5 // pred_check
        %p2100 = pneg %p2099
      $region78: #{tpu_custom_call.1} parent=5 // pred_check_branch
        %2102 = sbr.rel (%p2100) target = $region80
      $region79: #{tpu_custom_call.1} parent=5 // pred_region
        %s2103 = ssub.s32 %s25, 2
        // Predicated region
        $region81: #{tpu_custom_call.1} parent=79 // pred_check
          %p2104 = pneg %p216
        $region82: #{tpu_custom_call.1} parent=79 // pred_check_branch
          %2106 = sbr.rel (%p2104) target = $region84
        $region83: #{tpu_custom_call.1} parent=79 // pred_region
          %s2107 = sand.u32 %s201, 1
          %s2108 = scalar_lea.sflag [#allocation4], %s2107
          %s2109 = sand.u32 %s201, 1
          %s2110 = smul.addr %s2109, 8
          %s2111 = scalar_lea.vmem [#allocation11], %s2110
          %2112 = dma.done %s2108, 128
        $region84: #{tpu_custom_call.1} parent=79 // pred_fallthru
          _
        // Predicated region
        $region85: #{tpu_custom_call.1} parent=79 // pred_check
          %p2113 = pneg %p242
        $region86: #{tpu_custom_call.1} parent=79 // pred_check_branch
          %2115 = sbr.rel (%p2113) target = $region88
        $region87: #{tpu_custom_call.1} parent=79 // pred_region
          %s2116 = smul.u32 8, %s31
          %p2117 = scmp.lt.s32.totalorder %s2116, 15
          %s2118 = scalar_select %p2117, %s2116, 15
          %s2119 = scalar_lea.vmem %s8, %s2118
        $region88: #{tpu_custom_call.1} parent=79 // pred_fallthru
          _
      $region80: #{tpu_custom_call.1} parent=5 // pred_fallthru
        _
    $region6: #{tpu_custom_call.1} parent=1 // loop_footer
      %s29 = sadd.s32 1, %s25
    $region7: #{tpu_custom_call.1} parent=1 // loop_footer_branch
      %24 = sbr.rel target = $region3
    $region8: #{tpu_custom_call.1} parent=1 // loop_exit
      _
    %2120 = vsyncpa [#allocation3], 1
    %s2121 = scalar_lea.sflag [#allocation3], 1
    %2122 = vsyncpa %s2121, 1
    %2123 = vsyncpa [#allocation6], 1
    %s2124 = scalar_lea.sflag [#allocation6], 1
    %2125 = vsyncpa %s2124, 1
    %2126 = vsyncpa [#allocation9], 1
    %2127 = vsyncpa [#allocation4], 1
    %s2128 = scalar_lea.sflag [#allocation4], 1
    %2129 = vsyncpa %s2128, 1

</llo_original>
